<compile_context>
chip_gen: v5e
topology: v5e:2x2
jax: 0.10.0
libtpu: 0.0.40
codegen_flags: <defaults>
</compile_context>

<pallas_src>
import functools

import jax
import jax.numpy as jnp
from jax.experimental import pallas as pl
from jax.experimental.pallas import tpu as pltpu

LEAKY_SLOPE = 0.01   # nn.LeakyReLU default
BN_EPS = 1e-5        # nn.BatchNorm1d default


# ----------------------------------------------------------------------------
# Fused Pallas kernel: 4 ChebConv layers (+BN+LeakyReLU) + MSE, [C, N] layout
# ----------------------------------------------------------------------------
def _fused_forward_kernel(lhat_t_ref, xt_ref,
                          w1_ref, b1_ref, g1_ref, be1_ref,
                          w2_ref, b2_ref, g2_ref, be2_ref,
                          w3_ref, b3_ref, g3_ref, be3_ref,
                          w4_ref, b4_ref,
                          xhat_t_ref, loss_ref, *, K):
    """All refs are whole-array VMEM.

    lhat_t_ref : [N, N]            bfloat16  transpose of scaled Laplacian
    xt_ref     : [Cin, N]          float32   node features, channels-major
    w*_ref     : [K, Cout_l, Cin_l] bfloat16 (per-k transposed Cheb weights)
    b*/g*/be*  : [Cout_l, 1]       float32
    xhat_t_ref : [Cin, N]          float32   reconstruction (channels-major)
    loss_ref   : [1, 1]            float32   mean-squared reconstruction error
    """
    x = xt_ref[...]                            # [Cin, N] f32 (small, reused at end)
    n = x.shape[1]
    inv_n = 1.0 / float(n)

    def cheb_layer(h, w_ref, b_ref, g_ref=None, be_ref=None):
        # h: [Cin_l, N] f32.  acc = sum_k W_k^T @ T_k  (all outputs lane-dense).
        # T0 = h
        acc = jnp.dot(w_ref[0], h.astype(jnp.bfloat16),
                      preferred_element_type=jnp.float32)
        if K > 1:
            # T1^T = H @ L_hat^T   (== (L_hat @ H)^T in the reference layout)
            t_prev = h
            t_cur = jnp.dot(h.astype(jnp.bfloat16), lhat_t_ref[...],
                            preferred_element_type=jnp.float32)
            acc = acc + jnp.dot(w_ref[1], t_cur.astype(jnp.bfloat16),
                                preferred_element_type=jnp.float32)
            for k in range(2, K):
                t_next = (2.0 * jnp.dot(t_cur.astype(jnp.bfloat16),
                                        lhat_t_ref[...],
                                        preferred_element_type=jnp.float32)
                          - t_prev)
                acc = acc + jnp.dot(w_ref[k], t_next.astype(jnp.bfloat16),
                                    preferred_element_type=jnp.float32)
                t_prev, t_cur = t_cur, t_next
        out = acc + b_ref[...]                 # [Cout, N] + [Cout, 1]
        if g_ref is not None:
            # BatchNorm1d (training-mode batch stats) over nodes (lane axis).
            s = jnp.sum(out, axis=1, keepdims=True)
            sq = jnp.sum(out * out, axis=1, keepdims=True)
            mean = s * inv_n
            var = jnp.maximum(sq * inv_n - mean * mean, 0.0)
            out = (out - mean) * jax.lax.rsqrt(var + BN_EPS)
            out = out * g_ref[...] + be_ref[...]
            # LeakyReLU
            out = jnp.where(out > 0.0, out, LEAKY_SLOPE * out)
        return out

    h = cheb_layer(x, w1_ref, b1_ref, g1_ref, be1_ref)
    z = cheb_layer(h, w2_ref, b2_ref, g2_ref, be2_ref)
    h = cheb_layer(z, w3_ref, b3_ref, g3_ref, be3_ref)
    x_hat = cheb_layer(h, w4_ref, b4_ref)                   # no BN / act

    xhat_t_ref[...] = x_hat.astype(xhat_t_ref.dtype)

    # MSE over all elements, fused (x already resident in VMEM).
    d = x_hat - x
    sq = d * d
    total = jnp.sum(jnp.sum(sq, axis=1, keepdims=True), axis=0, keepdims=True)
    loss_ref[...] = total * (1.0 / float(x.shape[0] * x.shape[1]))


# ----------------------------------------------------------------------------
# Wrappers / glue
# ----------------------------------------------------------------------------
def scaled_laplacian(edge_index, num_nodes):
    """L_hat = -D^{-1/2} A D^{-1/2}  (PyG ChebConv: sym norm, lambda_max=2).

    Self-loops removed; adjacency taken as given (no symmetrization).
    """
    src, dst = edge_index[0], edge_index[1]
    a = jnp.zeros((num_nodes, num_nodes), jnp.float32).at[src, dst].set(1.0)
    a = a * (1.0 - jnp.eye(num_nodes, dtype=jnp.float32))   # strip self-loops
    deg = jnp.sum(a, axis=1)
    dinv = jnp.where(deg > 0, 1.0 / jnp.sqrt(deg), 0.0)
    return -(dinv[:, None] * a * dinv[None, :])


def init_params(key, in_channels, hidden_channels, K):
    half = hidden_channels // 2
    dims = [(in_channels, hidden_channels),
            (hidden_channels, half),
            (half, hidden_channels),
            (hidden_channels, in_channels)]
    params = {}
    for i, (cin, cout) in enumerate(dims, start=1):
        key, kw = jax.random.split(key)
        scale = jnp.sqrt(6.0 / (cin + cout))
        params[f"w{i}"] = jax.random.uniform(
            kw, (K, cin, cout), jnp.float32, -scale, scale)
        params[f"b{i}"] = jnp.zeros((cout, 1), jnp.float32)
        params[f"g{i}"] = jnp.ones((cout, 1), jnp.float32)    # BN gamma
        params[f"be{i}"] = jnp.zeros((cout, 1), jnp.float32)  # BN beta
    return params


def _vmem_limit_bytes(n, cin, params):
    """Single-buffered (grid-less) VMEM estimate, capped by device capacity."""
    w_bytes = sum(int(params[f"w{i}"].size) * 2 for i in (1, 2, 3, 4))  # bf16
    bn_bytes = sum(int(v.size) * 4 for k_, v in params.items()
                   if k_[0] in ("b", "g"))
    max_cin = max(params[f"w{i}"].shape[1] for i in (1, 2, 3, 4))
    max_cout = max(params[f"w{i}"].shape[2] for i in (1, 2, 3, 4))
    lhat_bytes = n * n * 2                                   # bf16, single copy
    x_bytes = 2 * (n * cin * 4)                              # x^T in + xhat^T out
    # live activation slabs: 3 Chebyshev term buffers + accumulator + layer out
    act_bytes = 4 * n * (3 * max_cin + 2 * max_cout)
    est = lhat_bytes + x_bytes + w_bytes + bn_bytes + act_bytes
    try:
        cap = pltpu.get_tpu_info().vmem_capacity_bytes
    except Exception:                                        # pragma: no cover
        cap = 64 << 20                                       # v7x lower bound
    headroom = 8 << 20                                       # compiler scratch
    return int(min(max(int(est * 1.5) + (4 << 20), 8 << 20), cap - headroom))


def cheb_anomaly_detector_forward(params, x, lhat):
    """Mirrors ChebAnomalyDetector.forward(x, edge_index): (x_hat, mse_loss)."""
    n, cin = x.shape
    K = params["w1"].shape[0]

    # Host-side prep: transpose of the bf16 Laplacian, channels-major features,
    # per-k transposed weights [K, Cout, Cin] bf16.
    args = [lhat.T.astype(jnp.bfloat16), x.T]
    for i in (1, 2, 3, 4):
        w = params[f"w{i}"]                                   # [K, Cin, Cout]
        args.append(jnp.transpose(w, (0, 2, 1)).astype(jnp.bfloat16))
        args.append(params[f"b{i}"])
        if i < 4:
            args.append(params[f"g{i}"])
            args.append(params[f"be{i}"])

    vmem_limit = _vmem_limit_bytes(n, cin, params)

    vmem = pl.BlockSpec(memory_space=pltpu.MemorySpace.VMEM)
    kernel = functools.partial(_fused_forward_kernel, K=K)
    xhat_t, loss = pl.pallas_call(
        kernel,
        out_shape=(jax.ShapeDtypeStruct((cin, n), jnp.float32),
                   jax.ShapeDtypeStruct((1, 1), jnp.float32)),
        in_specs=[vmem] * len(args),
        out_specs=(vmem, vmem),
        compiler_params=pltpu.CompilerParams(vmem_limit_bytes=vmem_limit),
    )(*args)
    return xhat_t.T, loss[0, 0]
    # NOTE: dropout / lin belong to the `ft` head only; they do not appear in
    # forward(), so they are intentionally not part of this kernel path.


# ----------------------------------------------------------------------------
if __name__ == "__main__":
    N = 128           # nodes (lane axis -> full 128-wide stores)
    IN_CHANNELS = 8
    HIDDEN = 32       # encoder.hidden_channels
    K = 3             # Chebyshev order

    key = jax.random.PRNGKey(0)
    key, kx = jax.random.split(key)
    x = jax.random.normal(kx, (N, IN_CHANNELS), jnp.float32)

    # Undirected ring graph: edge_index shape [2, 2N]
    idx = jnp.arange(N, dtype=jnp.int32)
    src = jnp.concatenate([idx, (idx + 1) % N])
    dst = jnp.concatenate([(idx + 1) % N, idx])
    edge_index = jnp.stack([src, dst], axis=0)

    lhat = scaled_laplacian(edge_index, N)
    params = init_params(key, IN_CHANNELS, HIDDEN, K)

    fwd = jax.jit(cheb_anomaly_detector_forward)
    x_hat, loss = fwd(params, x, lhat)
    jax.block_until_ready((x_hat, loss))

    assert x_hat.shape == x.shape and x_hat.dtype == jnp.float32
    assert loss.shape == () and jnp.isfinite(loss)
    print("KERNEL_OK")
</pallas_src>

<mosaic_0001>
module attributes {stable_mosaic.version = 11 : i64} {
  func.func @_fused_forward_kernel(%arg0: memref<128x128xbf16, #tpu.memory_space<vmem>>, %arg1: memref<8x128xf32, #tpu.memory_space<vmem>>, %arg2: memref<3x32x8xbf16, #tpu.memory_space<vmem>>, %arg3: memref<32x1xf32, #tpu.memory_space<vmem>>, %arg4: memref<32x1xf32, #tpu.memory_space<vmem>>, %arg5: memref<32x1xf32, #tpu.memory_space<vmem>>, %arg6: memref<3x16x32xbf16, #tpu.memory_space<vmem>>, %arg7: memref<16x1xf32, #tpu.memory_space<vmem>>, %arg8: memref<16x1xf32, #tpu.memory_space<vmem>>, %arg9: memref<16x1xf32, #tpu.memory_space<vmem>>, %arg10: memref<3x32x16xbf16, #tpu.memory_space<vmem>>, %arg11: memref<32x1xf32, #tpu.memory_space<vmem>>, %arg12: memref<32x1xf32, #tpu.memory_space<vmem>>, %arg13: memref<32x1xf32, #tpu.memory_space<vmem>>, %arg14: memref<3x8x32xbf16, #tpu.memory_space<vmem>>, %arg15: memref<8x1xf32, #tpu.memory_space<vmem>>, %arg16: memref<8x128xf32, #tpu.memory_space<vmem>>, %arg17: memref<1x1xf32, #tpu.memory_space<vmem>>) attributes {dimension_semantics = [], scalar_prefetch = 0 : i64, scratch_operands = 0 : i64, tpu.core_type = #tpu.core_type<tc>} {
    %c0 = arith.constant 0 : index
    %c0_0 = arith.constant 0 : index
    %0 = vector.load %arg1[%c0, %c0_0] : memref<8x128xf32, #tpu.memory_space<vmem>>, vector<8x128xf32>
    %c0_1 = arith.constant 0 : index
    %c0_2 = arith.constant 0 : index
    %c0_3 = arith.constant 0 : index
    %1 = vector.load %arg2[%c0_1, %c0_2, %c0_3] : memref<3x32x8xbf16, #tpu.memory_space<vmem>>, vector<1x32x8xbf16>
    %2 = vector.shape_cast %1 : vector<1x32x8xbf16> to vector<32x8xbf16>
    %3 = arith.truncf %0 : vector<8x128xf32> to vector<8x128xbf16>
    %cst = arith.constant dense<0.000000e+00> : vector<32x128xf32>
    %4 = tpu.matmul %2, %3, %cst {dimension_numbers = #tpu.dot_dimension_numbers<[1], [0], [0], [1], [0, 0, 1, 1], [], []>} : vector<32x8xbf16>, vector<8x128xbf16>, vector<32x128xf32> -> vector<32x128xf32>
    %5 = arith.truncf %0 : vector<8x128xf32> to vector<8x128xbf16>
    %c0_4 = arith.constant 0 : index
    %c0_5 = arith.constant 0 : index
    %6 = vector.load %arg0[%c0_4, %c0_5] : memref<128x128xbf16, #tpu.memory_space<vmem>>, vector<128x128xbf16>
    %cst_6 = arith.constant dense<0.000000e+00> : vector<8x128xf32>
    %7 = tpu.matmul %5, %6, %cst_6 {dimension_numbers = #tpu.dot_dimension_numbers<[1], [0], [0], [1], [0, 0, 1, 1], [], []>} : vector<8x128xbf16>, vector<128x128xbf16>, vector<8x128xf32> -> vector<8x128xf32>
    %c1 = arith.constant 1 : index
    %c0_7 = arith.constant 0 : index
    %c0_8 = arith.constant 0 : index
    %8 = vector.load %arg2[%c1, %c0_7, %c0_8] : memref<3x32x8xbf16, #tpu.memory_space<vmem>>, vector<1x32x8xbf16>
    %9 = vector.shape_cast %8 : vector<1x32x8xbf16> to vector<32x8xbf16>
    %10 = arith.truncf %7 : vector<8x128xf32> to vector<8x128xbf16>
    %cst_9 = arith.constant dense<0.000000e+00> : vector<32x128xf32>
    %11 = tpu.matmul %9, %10, %cst_9 {dimension_numbers = #tpu.dot_dimension_numbers<[1], [0], [0], [1], [0, 0, 1, 1], [], []>} : vector<32x8xbf16>, vector<8x128xbf16>, vector<32x128xf32> -> vector<32x128xf32>
    %12 = arith.addf %4, %11 : vector<32x128xf32>
    %13 = arith.truncf %7 : vector<8x128xf32> to vector<8x128xbf16>
    %c0_10 = arith.constant 0 : index
    %c0_11 = arith.constant 0 : index
    %14 = vector.load %arg0[%c0_10, %c0_11] : memref<128x128xbf16, #tpu.memory_space<vmem>>, vector<128x128xbf16>
    %cst_12 = arith.constant dense<0.000000e+00> : vector<8x128xf32>
    %15 = tpu.matmul %13, %14, %cst_12 {dimension_numbers = #tpu.dot_dimension_numbers<[1], [0], [0], [1], [0, 0, 1, 1], [], []>} : vector<8x128xbf16>, vector<128x128xbf16>, vector<8x128xf32> -> vector<8x128xf32>
    %cst_13 = arith.constant 2.000000e+00 : f32
    %16 = vector.broadcast %cst_13 : f32 to vector<8x128xf32>
    %17 = arith.mulf %16, %15 : vector<8x128xf32>
    %18 = arith.subf %17, %0 : vector<8x128xf32>
    %c2 = arith.constant 2 : index
    %c0_14 = arith.constant 0 : index
    %c0_15 = arith.constant 0 : index
    %19 = vector.load %arg2[%c2, %c0_14, %c0_15] : memref<3x32x8xbf16, #tpu.memory_space<vmem>>, vector<1x32x8xbf16>
    %20 = vector.shape_cast %19 : vector<1x32x8xbf16> to vector<32x8xbf16>
    %21 = arith.truncf %18 : vector<8x128xf32> to vector<8x128xbf16>
    %cst_16 = arith.constant dense<0.000000e+00> : vector<32x128xf32>
    %22 = tpu.matmul %20, %21, %cst_16 {dimension_numbers = #tpu.dot_dimension_numbers<[1], [0], [0], [1], [0, 0, 1, 1], [], []>} : vector<32x8xbf16>, vector<8x128xbf16>, vector<32x128xf32> -> vector<32x128xf32>
    %23 = arith.addf %12, %22 : vector<32x128xf32>
    %c0_17 = arith.constant 0 : index
    %c0_18 = arith.constant 0 : index
    %24 = vector.load %arg3[%c0_17, %c0_18] : memref<32x1xf32, #tpu.memory_space<vmem>>, vector<32x1xf32>
    %25 = vector.broadcast %24 : vector<32x1xf32> to vector<32x128xf32>
    %26 = arith.addf %23, %25 : vector<32x128xf32>
    %cst_19 = arith.constant dense<0.000000e+00> : vector<32xf32>
    %27 = vector.multi_reduction <add>, %26, %cst_19 [1] : vector<32x128xf32> to vector<32xf32>
    %28 = vector.shape_cast %27 : vector<32xf32> to vector<32x1xf32>
    %29 = arith.mulf %26, %26 : vector<32x128xf32>
    %cst_20 = arith.constant dense<0.000000e+00> : vector<32xf32>
    %30 = vector.multi_reduction <add>, %29, %cst_20 [1] : vector<32x128xf32> to vector<32xf32>
    %31 = vector.shape_cast %30 : vector<32xf32> to vector<32x1xf32>
    %cst_21 = arith.constant 7.812500e-03 : f32
    %32 = vector.broadcast %cst_21 : f32 to vector<32x1xf32>
    %33 = arith.mulf %28, %32 : vector<32x1xf32>
    %cst_22 = arith.constant 7.812500e-03 : f32
    %34 = vector.broadcast %cst_22 : f32 to vector<32x1xf32>
    %35 = arith.mulf %31, %34 : vector<32x1xf32>
    %36 = arith.mulf %33, %33 : vector<32x1xf32>
    %37 = arith.subf %35, %36 : vector<32x1xf32>
    %cst_23 = arith.constant 0.000000e+00 : f32
    %38 = vector.broadcast %cst_23 : f32 to vector<32x1xf32>
    %39 = arith.maximumf %37, %38 : vector<32x1xf32>
    %40 = vector.broadcast %33 : vector<32x1xf32> to vector<32x128xf32>
    %41 = arith.subf %26, %40 : vector<32x128xf32>
    %cst_24 = arith.constant 9.99999974E-6 : f32
    %42 = vector.broadcast %cst_24 : f32 to vector<32x1xf32>
    %43 = arith.addf %39, %42 : vector<32x1xf32>
    %44 = math.rsqrt %43 : vector<32x1xf32>
    %45 = vector.broadcast %44 : vector<32x1xf32> to vector<32x128xf32>
    %46 = arith.mulf %41, %45 : vector<32x128xf32>
    %c0_25 = arith.constant 0 : index
    %c0_26 = arith.constant 0 : index
    %47 = vector.load %arg4[%c0_25, %c0_26] : memref<32x1xf32, #tpu.memory_space<vmem>>, vector<32x1xf32>
    %48 = vector.broadcast %47 : vector<32x1xf32> to vector<32x128xf32>
    %49 = arith.mulf %46, %48 : vector<32x128xf32>
    %c0_27 = arith.constant 0 : index
    %c0_28 = arith.constant 0 : index
    %50 = vector.load %arg5[%c0_27, %c0_28] : memref<32x1xf32, #tpu.memory_space<vmem>>, vector<32x1xf32>
    %51 = vector.broadcast %50 : vector<32x1xf32> to vector<32x128xf32>
    %52 = arith.addf %49, %51 : vector<32x128xf32>
    %cst_29 = arith.constant 0.000000e+00 : f32
    %53 = vector.broadcast %cst_29 : f32 to vector<32x128xf32>
    %54 = arith.cmpf ogt, %52, %53 : vector<32x128xf32>
    %cst_30 = arith.constant 0.00999999977 : f32
    %55 = vector.broadcast %cst_30 : f32 to vector<32x128xf32>
    %56 = arith.mulf %55, %52 : vector<32x128xf32>
    %57 = arith.select %54, %52, %56 : vector<32x128xi1>, vector<32x128xf32>
    %c0_31 = arith.constant 0 : index
    %c0_32 = arith.constant 0 : index
    %c0_33 = arith.constant 0 : index
    %58 = vector.load %arg6[%c0_31, %c0_32, %c0_33] : memref<3x16x32xbf16, #tpu.memory_space<vmem>>, vector<1x16x32xbf16>
    %59 = vector.shape_cast %58 : vector<1x16x32xbf16> to vector<16x32xbf16>
    %60 = arith.truncf %57 : vector<32x128xf32> to vector<32x128xbf16>
    %cst_34 = arith.constant dense<0.000000e+00> : vector<16x128xf32>
    %61 = tpu.matmul %59, %60, %cst_34 {dimension_numbers = #tpu.dot_dimension_numbers<[1], [0], [0], [1], [0, 0, 1, 1], [], []>} : vector<16x32xbf16>, vector<32x128xbf16>, vector<16x128xf32> -> vector<16x128xf32>
    %62 = arith.truncf %57 : vector<32x128xf32> to vector<32x128xbf16>
    %c0_35 = arith.constant 0 : index
    %c0_36 = arith.constant 0 : index
    %63 = vector.load %arg0[%c0_35, %c0_36] : memref<128x128xbf16, #tpu.memory_space<vmem>>, vector<128x128xbf16>
    %cst_37 = arith.constant dense<0.000000e+00> : vector<32x128xf32>
    %64 = tpu.matmul %62, %63, %cst_37 {dimension_numbers = #tpu.dot_dimension_numbers<[1], [0], [0], [1], [0, 0, 1, 1], [], []>} : vector<32x128xbf16>, vector<128x128xbf16>, vector<32x128xf32> -> vector<32x128xf32>
    %c1_38 = arith.constant 1 : index
    %c0_39 = arith.constant 0 : index
    %c0_40 = arith.constant 0 : index
    %65 = vector.load %arg6[%c1_38, %c0_39, %c0_40] : memref<3x16x32xbf16, #tpu.memory_space<vmem>>, vector<1x16x32xbf16>
    %66 = vector.shape_cast %65 : vector<1x16x32xbf16> to vector<16x32xbf16>
    %67 = arith.truncf %64 : vector<32x128xf32> to vector<32x128xbf16>
    %cst_41 = arith.constant dense<0.000000e+00> : vector<16x128xf32>
    %68 = tpu.matmul %66, %67, %cst_41 {dimension_numbers = #tpu.dot_dimension_numbers<[1], [0], [0], [1], [0, 0, 1, 1], [], []>} : vector<16x32xbf16>, vector<32x128xbf16>, vector<16x128xf32> -> vector<16x128xf32>
    %69 = arith.addf %61, %68 : vector<16x128xf32>
    %70 = arith.truncf %64 : vector<32x128xf32> to vector<32x128xbf16>
    %c0_42 = arith.constant 0 : index
    %c0_43 = arith.constant 0 : index
    %71 = vector.load %arg0[%c0_42, %c0_43] : memref<128x128xbf16, #tpu.memory_space<vmem>>, vector<128x128xbf16>
    %cst_44 = arith.constant dense<0.000000e+00> : vector<32x128xf32>
    %72 = tpu.matmul %70, %71, %cst_44 {dimension_numbers = #tpu.dot_dimension_numbers<[1], [0], [0], [1], [0, 0, 1, 1], [], []>} : vector<32x128xbf16>, vector<128x128xbf16>, vector<32x128xf32> -> vector<32x128xf32>
    %cst_45 = arith.constant 2.000000e+00 : f32
    %73 = vector.broadcast %cst_45 : f32 to vector<32x128xf32>
    %74 = arith.mulf %73, %72 : vector<32x128xf32>
    %75 = arith.subf %74, %57 : vector<32x128xf32>
    %c2_46 = arith.constant 2 : index
    %c0_47 = arith.constant 0 : index
    %c0_48 = arith.constant 0 : index
    %76 = vector.load %arg6[%c2_46, %c0_47, %c0_48] : memref<3x16x32xbf16, #tpu.memory_space<vmem>>, vector<1x16x32xbf16>
    %77 = vector.shape_cast %76 : vector<1x16x32xbf16> to vector<16x32xbf16>
    %78 = arith.truncf %75 : vector<32x128xf32> to vector<32x128xbf16>
    %cst_49 = arith.constant dense<0.000000e+00> : vector<16x128xf32>
    %79 = tpu.matmul %77, %78, %cst_49 {dimension_numbers = #tpu.dot_dimension_numbers<[1], [0], [0], [1], [0, 0, 1, 1], [], []>} : vector<16x32xbf16>, vector<32x128xbf16>, vector<16x128xf32> -> vector<16x128xf32>
    %80 = arith.addf %69, %79 : vector<16x128xf32>
    %c0_50 = arith.constant 0 : index
    %c0_51 = arith.constant 0 : index
    %81 = vector.load %arg7[%c0_50, %c0_51] : memref<16x1xf32, #tpu.memory_space<vmem>>, vector<16x1xf32>
    %82 = vector.broadcast %81 : vector<16x1xf32> to vector<16x128xf32>
    %83 = arith.addf %80, %82 : vector<16x128xf32>
    %cst_52 = arith.constant dense<0.000000e+00> : vector<16xf32>
    %84 = vector.multi_reduction <add>, %83, %cst_52 [1] : vector<16x128xf32> to vector<16xf32>
    %85 = vector.shape_cast %84 : vector<16xf32> to vector<16x1xf32>
    %86 = arith.mulf %83, %83 : vector<16x128xf32>
    %cst_53 = arith.constant dense<0.000000e+00> : vector<16xf32>
    %87 = vector.multi_reduction <add>, %86, %cst_53 [1] : vector<16x128xf32> to vector<16xf32>
    %88 = vector.shape_cast %87 : vector<16xf32> to vector<16x1xf32>
    %cst_54 = arith.constant 7.812500e-03 : f32
    %89 = vector.broadcast %cst_54 : f32 to vector<16x1xf32>
    %90 = arith.mulf %85, %89 : vector<16x1xf32>
    %cst_55 = arith.constant 7.812500e-03 : f32
    %91 = vector.broadcast %cst_55 : f32 to vector<16x1xf32>
    %92 = arith.mulf %88, %91 : vector<16x1xf32>
    %93 = arith.mulf %90, %90 : vector<16x1xf32>
    %94 = arith.subf %92, %93 : vector<16x1xf32>
    %cst_56 = arith.constant 0.000000e+00 : f32
    %95 = vector.broadcast %cst_56 : f32 to vector<16x1xf32>
    %96 = arith.maximumf %94, %95 : vector<16x1xf32>
    %97 = vector.broadcast %90 : vector<16x1xf32> to vector<16x128xf32>
    %98 = arith.subf %83, %97 : vector<16x128xf32>
    %cst_57 = arith.constant 9.99999974E-6 : f32
    %99 = vector.broadcast %cst_57 : f32 to vector<16x1xf32>
    %100 = arith.addf %96, %99 : vector<16x1xf32>
    %101 = math.rsqrt %100 : vector<16x1xf32>
    %102 = vector.broadcast %101 : vector<16x1xf32> to vector<16x128xf32>
    %103 = arith.mulf %98, %102 : vector<16x128xf32>
    %c0_58 = arith.constant 0 : index
    %c0_59 = arith.constant 0 : index
    %104 = vector.load %arg8[%c0_58, %c0_59] : memref<16x1xf32, #tpu.memory_space<vmem>>, vector<16x1xf32>
    %105 = vector.broadcast %104 : vector<16x1xf32> to vector<16x128xf32>
    %106 = arith.mulf %103, %105 : vector<16x128xf32>
    %c0_60 = arith.constant 0 : index
    %c0_61 = arith.constant 0 : index
    %107 = vector.load %arg9[%c0_60, %c0_61] : memref<16x1xf32, #tpu.memory_space<vmem>>, vector<16x1xf32>
    %108 = vector.broadcast %107 : vector<16x1xf32> to vector<16x128xf32>
    %109 = arith.addf %106, %108 : vector<16x128xf32>
    %cst_62 = arith.constant 0.000000e+00 : f32
    %110 = vector.broadcast %cst_62 : f32 to vector<16x128xf32>
    %111 = arith.cmpf ogt, %109, %110 : vector<16x128xf32>
    %cst_63 = arith.constant 0.00999999977 : f32
    %112 = vector.broadcast %cst_63 : f32 to vector<16x128xf32>
    %113 = arith.mulf %112, %109 : vector<16x128xf32>
    %114 = arith.select %111, %109, %113 : vector<16x128xi1>, vector<16x128xf32>
    %c0_64 = arith.constant 0 : index
    %c0_65 = arith.constant 0 : index
    %c0_66 = arith.constant 0 : index
    %115 = vector.load %arg10[%c0_64, %c0_65, %c0_66] : memref<3x32x16xbf16, #tpu.memory_space<vmem>>, vector<1x32x16xbf16>
    %116 = vector.shape_cast %115 : vector<1x32x16xbf16> to vector<32x16xbf16>
    %117 = arith.truncf %114 : vector<16x128xf32> to vector<16x128xbf16>
    %cst_67 = arith.constant dense<0.000000e+00> : vector<32x128xf32>
    %118 = tpu.matmul %116, %117, %cst_67 {dimension_numbers = #tpu.dot_dimension_numbers<[1], [0], [0], [1], [0, 0, 1, 1], [], []>} : vector<32x16xbf16>, vector<16x128xbf16>, vector<32x128xf32> -> vector<32x128xf32>
    %119 = arith.truncf %114 : vector<16x128xf32> to vector<16x128xbf16>
    %c0_68 = arith.constant 0 : index
    %c0_69 = arith.constant 0 : index
    %120 = vector.load %arg0[%c0_68, %c0_69] : memref<128x128xbf16, #tpu.memory_space<vmem>>, vector<128x128xbf16>
    %cst_70 = arith.constant dense<0.000000e+00> : vector<16x128xf32>
    %121 = tpu.matmul %119, %120, %cst_70 {dimension_numbers = #tpu.dot_dimension_numbers<[1], [0], [0], [1], [0, 0, 1, 1], [], []>} : vector<16x128xbf16>, vector<128x128xbf16>, vector<16x128xf32> -> vector<16x128xf32>
    %c1_71 = arith.constant 1 : index
    %c0_72 = arith.constant 0 : index
    %c0_73 = arith.constant 0 : index
    %122 = vector.load %arg10[%c1_71, %c0_72, %c0_73] : memref<3x32x16xbf16, #tpu.memory_space<vmem>>, vector<1x32x16xbf16>
    %123 = vector.shape_cast %122 : vector<1x32x16xbf16> to vector<32x16xbf16>
    %124 = arith.truncf %121 : vector<16x128xf32> to vector<16x128xbf16>
    %cst_74 = arith.constant dense<0.000000e+00> : vector<32x128xf32>
    %125 = tpu.matmul %123, %124, %cst_74 {dimension_numbers = #tpu.dot_dimension_numbers<[1], [0], [0], [1], [0, 0, 1, 1], [], []>} : vector<32x16xbf16>, vector<16x128xbf16>, vector<32x128xf32> -> vector<32x128xf32>
    %126 = arith.addf %118, %125 : vector<32x128xf32>
    %127 = arith.truncf %121 : vector<16x128xf32> to vector<16x128xbf16>
    %c0_75 = arith.constant 0 : index
    %c0_76 = arith.constant 0 : index
    %128 = vector.load %arg0[%c0_75, %c0_76] : memref<128x128xbf16, #tpu.memory_space<vmem>>, vector<128x128xbf16>
    %cst_77 = arith.constant dense<0.000000e+00> : vector<16x128xf32>
    %129 = tpu.matmul %127, %128, %cst_77 {dimension_numbers = #tpu.dot_dimension_numbers<[1], [0], [0], [1], [0, 0, 1, 1], [], []>} : vector<16x128xbf16>, vector<128x128xbf16>, vector<16x128xf32> -> vector<16x128xf32>
    %cst_78 = arith.constant 2.000000e+00 : f32
    %130 = vector.broadcast %cst_78 : f32 to vector<16x128xf32>
    %131 = arith.mulf %130, %129 : vector<16x128xf32>
    %132 = arith.subf %131, %114 : vector<16x128xf32>
    %c2_79 = arith.constant 2 : index
    %c0_80 = arith.constant 0 : index
    %c0_81 = arith.constant 0 : index
    %133 = vector.load %arg10[%c2_79, %c0_80, %c0_81] : memref<3x32x16xbf16, #tpu.memory_space<vmem>>, vector<1x32x16xbf16>
    %134 = vector.shape_cast %133 : vector<1x32x16xbf16> to vector<32x16xbf16>
    %135 = arith.truncf %132 : vector<16x128xf32> to vector<16x128xbf16>
    %cst_82 = arith.constant dense<0.000000e+00> : vector<32x128xf32>
    %136 = tpu.matmul %134, %135, %cst_82 {dimension_numbers = #tpu.dot_dimension_numbers<[1], [0], [0], [1], [0, 0, 1, 1], [], []>} : vector<32x16xbf16>, vector<16x128xbf16>, vector<32x128xf32> -> vector<32x128xf32>
    %137 = arith.addf %126, %136 : vector<32x128xf32>
    %c0_83 = arith.constant 0 : index
    %c0_84 = arith.constant 0 : index
    %138 = vector.load %arg11[%c0_83, %c0_84] : memref<32x1xf32, #tpu.memory_space<vmem>>, vector<32x1xf32>
    %139 = vector.broadcast %138 : vector<32x1xf32> to vector<32x128xf32>
    %140 = arith.addf %137, %139 : vector<32x128xf32>
    %cst_85 = arith.constant dense<0.000000e+00> : vector<32xf32>
    %141 = vector.multi_reduction <add>, %140, %cst_85 [1] : vector<32x128xf32> to vector<32xf32>
    %142 = vector.shape_cast %141 : vector<32xf32> to vector<32x1xf32>
    %143 = arith.mulf %140, %140 : vector<32x128xf32>
    %cst_86 = arith.constant dense<0.000000e+00> : vector<32xf32>
    %144 = vector.multi_reduction <add>, %143, %cst_86 [1] : vector<32x128xf32> to vector<32xf32>
    %145 = vector.shape_cast %144 : vector<32xf32> to vector<32x1xf32>
    %cst_87 = arith.constant 7.812500e-03 : f32
    %146 = vector.broadcast %cst_87 : f32 to vector<32x1xf32>
    %147 = arith.mulf %142, %146 : vector<32x1xf32>
    %cst_88 = arith.constant 7.812500e-03 : f32
    %148 = vector.broadcast %cst_88 : f32 to vector<32x1xf32>
    %149 = arith.mulf %145, %148 : vector<32x1xf32>
    %150 = arith.mulf %147, %147 : vector<32x1xf32>
    %151 = arith.subf %149, %150 : vector<32x1xf32>
    %cst_89 = arith.constant 0.000000e+00 : f32
    %152 = vector.broadcast %cst_89 : f32 to vector<32x1xf32>
    %153 = arith.maximumf %151, %152 : vector<32x1xf32>
    %154 = vector.broadcast %147 : vector<32x1xf32> to vector<32x128xf32>
    %155 = arith.subf %140, %154 : vector<32x128xf32>
    %cst_90 = arith.constant 9.99999974E-6 : f32
    %156 = vector.broadcast %cst_90 : f32 to vector<32x1xf32>
    %157 = arith.addf %153, %156 : vector<32x1xf32>
    %158 = math.rsqrt %157 : vector<32x1xf32>
    %159 = vector.broadcast %158 : vector<32x1xf32> to vector<32x128xf32>
    %160 = arith.mulf %155, %159 : vector<32x128xf32>
    %c0_91 = arith.constant 0 : index
    %c0_92 = arith.constant 0 : index
    %161 = vector.load %arg12[%c0_91, %c0_92] : memref<32x1xf32, #tpu.memory_space<vmem>>, vector<32x1xf32>
    %162 = vector.broadcast %161 : vector<32x1xf32> to vector<32x128xf32>
    %163 = arith.mulf %160, %162 : vector<32x128xf32>
    %c0_93 = arith.constant 0 : index
    %c0_94 = arith.constant 0 : index
    %164 = vector.load %arg13[%c0_93, %c0_94] : memref<32x1xf32, #tpu.memory_space<vmem>>, vector<32x1xf32>
    %165 = vector.broadcast %164 : vector<32x1xf32> to vector<32x128xf32>
    %166 = arith.addf %163, %165 : vector<32x128xf32>
    %cst_95 = arith.constant 0.000000e+00 : f32
    %167 = vector.broadcast %cst_95 : f32 to vector<32x128xf32>
    %168 = arith.cmpf ogt, %166, %167 : vector<32x128xf32>
    %cst_96 = arith.constant 0.00999999977 : f32
    %169 = vector.broadcast %cst_96 : f32 to vector<32x128xf32>
    %170 = arith.mulf %169, %166 : vector<32x128xf32>
    %171 = arith.select %168, %166, %170 : vector<32x128xi1>, vector<32x128xf32>
    %c0_97 = arith.constant 0 : index
    %c0_98 = arith.constant 0 : index
    %c0_99 = arith.constant 0 : index
    %172 = vector.load %arg14[%c0_97, %c0_98, %c0_99] : memref<3x8x32xbf16, #tpu.memory_space<vmem>>, vector<1x8x32xbf16>
    %173 = vector.shape_cast %172 : vector<1x8x32xbf16> to vector<8x32xbf16>
    %174 = arith.truncf %171 : vector<32x128xf32> to vector<32x128xbf16>
    %cst_100 = arith.constant dense<0.000000e+00> : vector<8x128xf32>
    %175 = tpu.matmul %173, %174, %cst_100 {dimension_numbers = #tpu.dot_dimension_numbers<[1], [0], [0], [1], [0, 0, 1, 1], [], []>} : vector<8x32xbf16>, vector<32x128xbf16>, vector<8x128xf32> -> vector<8x128xf32>
    %176 = arith.truncf %171 : vector<32x128xf32> to vector<32x128xbf16>
    %c0_101 = arith.constant 0 : index
    %c0_102 = arith.constant 0 : index
    %177 = vector.load %arg0[%c0_101, %c0_102] : memref<128x128xbf16, #tpu.memory_space<vmem>>, vector<128x128xbf16>
    %cst_103 = arith.constant dense<0.000000e+00> : vector<32x128xf32>
    %178 = tpu.matmul %176, %177, %cst_103 {dimension_numbers = #tpu.dot_dimension_numbers<[1], [0], [0], [1], [0, 0, 1, 1], [], []>} : vector<32x128xbf16>, vector<128x128xbf16>, vector<32x128xf32> -> vector<32x128xf32>
    %c1_104 = arith.constant 1 : index
    %c0_105 = arith.constant 0 : index
    %c0_106 = arith.constant 0 : index
    %179 = vector.load %arg14[%c1_104, %c0_105, %c0_106] : memref<3x8x32xbf16, #tpu.memory_space<vmem>>, vector<1x8x32xbf16>
    %180 = vector.shape_cast %179 : vector<1x8x32xbf16> to vector<8x32xbf16>
    %181 = arith.truncf %178 : vector<32x128xf32> to vector<32x128xbf16>
    %cst_107 = arith.constant dense<0.000000e+00> : vector<8x128xf32>
    %182 = tpu.matmul %180, %181, %cst_107 {dimension_numbers = #tpu.dot_dimension_numbers<[1], [0], [0], [1], [0, 0, 1, 1], [], []>} : vector<8x32xbf16>, vector<32x128xbf16>, vector<8x128xf32> -> vector<8x128xf32>
    %183 = arith.addf %175, %182 : vector<8x128xf32>
    %184 = arith.truncf %178 : vector<32x128xf32> to vector<32x128xbf16>
    %c0_108 = arith.constant 0 : index
    %c0_109 = arith.constant 0 : index
    %185 = vector.load %arg0[%c0_108, %c0_109] : memref<128x128xbf16, #tpu.memory_space<vmem>>, vector<128x128xbf16>
    %cst_110 = arith.constant dense<0.000000e+00> : vector<32x128xf32>
    %186 = tpu.matmul %184, %185, %cst_110 {dimension_numbers = #tpu.dot_dimension_numbers<[1], [0], [0], [1], [0, 0, 1, 1], [], []>} : vector<32x128xbf16>, vector<128x128xbf16>, vector<32x128xf32> -> vector<32x128xf32>
    %cst_111 = arith.constant 2.000000e+00 : f32
    %187 = vector.broadcast %cst_111 : f32 to vector<32x128xf32>
    %188 = arith.mulf %187, %186 : vector<32x128xf32>
    %189 = arith.subf %188, %171 : vector<32x128xf32>
    %c2_112 = arith.constant 2 : index
    %c0_113 = arith.constant 0 : index
    %c0_114 = arith.constant 0 : index
    %190 = vector.load %arg14[%c2_112, %c0_113, %c0_114] : memref<3x8x32xbf16, #tpu.memory_space<vmem>>, vector<1x8x32xbf16>
    %191 = vector.shape_cast %190 : vector<1x8x32xbf16> to vector<8x32xbf16>
    %192 = arith.truncf %189 : vector<32x128xf32> to vector<32x128xbf16>
    %cst_115 = arith.constant dense<0.000000e+00> : vector<8x128xf32>
    %193 = tpu.matmul %191, %192, %cst_115 {dimension_numbers = #tpu.dot_dimension_numbers<[1], [0], [0], [1], [0, 0, 1, 1], [], []>} : vector<8x32xbf16>, vector<32x128xbf16>, vector<8x128xf32> -> vector<8x128xf32>
    %194 = arith.addf %183, %193 : vector<8x128xf32>
    %c0_116 = arith.constant 0 : index
    %c0_117 = arith.constant 0 : index
    %195 = vector.load %arg15[%c0_116, %c0_117] : memref<8x1xf32, #tpu.memory_space<vmem>>, vector<8x1xf32>
    %196 = vector.broadcast %195 : vector<8x1xf32> to vector<8x128xf32>
    %197 = arith.addf %194, %196 : vector<8x128xf32>
    %c0_118 = arith.constant 0 : index
    %c0_119 = arith.constant 0 : index
    %198 = vector.load %arg16[%c0_118, %c0_119] : memref<8x128xf32, #tpu.memory_space<vmem>>, vector<8x128xf32>
    tpu.vector_store %arg16[%c0_118, %c0_119], %197 {strides = array<i32>} : memref<8x128xf32, #tpu.memory_space<vmem>>, vector<8x128xf32>,
    %199 = arith.subf %197, %0 : vector<8x128xf32>
    %200 = arith.mulf %199, %199 : vector<8x128xf32>
    %cst_120 = arith.constant dense<0.000000e+00> : vector<8xf32>
    %201 = vector.multi_reduction <add>, %200, %cst_120 [1] : vector<8x128xf32> to vector<8xf32>
    %202 = vector.shape_cast %201 : vector<8xf32> to vector<8x1xf32>
    %cst_121 = arith.constant dense<0.000000e+00> : vector<1xf32>
    %203 = vector.multi_reduction <add>, %202, %cst_121 [0] : vector<8x1xf32> to vector<1xf32>
    %204 = vector.shape_cast %203 : vector<1xf32> to vector<1x1xf32>
    %cst_122 = arith.constant 9.765625E-4 : f32
    %205 = vector.broadcast %cst_122 : f32 to vector<1x1xf32>
    %206 = arith.mulf %204, %205 : vector<1x1xf32>
    %c0_123 = arith.constant 0 : index
    %c0_124 = arith.constant 0 : index
    %207 = vector.load %arg17[%c0_123, %c0_124] : memref<1x1xf32, #tpu.memory_space<vmem>>, vector<1x1xf32>
    tpu.vector_store %arg17[%c0_123, %c0_124], %206 {strides = array<i32>} : memref<1x1xf32, #tpu.memory_space<vmem>>, vector<1x1xf32>,
    return
  }
}

</mosaic_0001>

<llo_original>
// kernel: cheb_anomaly_detector_forward.1
$region0: #{cheb_anomaly_detector_forward.1}
  #allocation0 [shape = 'u32[]', space=smem, size = 0x4, offset = 0x4, fixed_abs, tag = 'smem constant byte address 0x4 - core index']
  #allocation1 [shape = 'u32[72,128]{1,0:T(1,128)}', space=vmem, size = 0x9000, scoped, tag = 'internal scratch']
  %s0 = inlined_call_operand.vmem [shape: bf16[128,128], index: 0, kind: input, shape index: {}]
  %s1 = inlined_call_operand.vmem [shape: f32[8,128], index: 1, kind: input, shape index: {}]
  %s2 = inlined_call_operand.vmem [shape: bf16[3,32,8], index: 2, kind: input, shape index: {}]
  %s3 = inlined_call_operand.vmem [shape: f32[32,1], index: 3, kind: input, shape index: {}]
  %s4 = inlined_call_operand.vmem [shape: f32[32,1], index: 4, kind: input, shape index: {}]
  %s5 = inlined_call_operand.vmem [shape: f32[32,1], index: 5, kind: input, shape index: {}]
  %s6 = inlined_call_operand.vmem [shape: bf16[3,16,32], index: 6, kind: input, shape index: {}]
  %s7 = inlined_call_operand.vmem [shape: f32[16,1], index: 7, kind: input, shape index: {}]
  %s8 = inlined_call_operand.vmem [shape: f32[16,1], index: 8, kind: input, shape index: {}]
  %s9 = inlined_call_operand.vmem [shape: f32[16,1], index: 9, kind: input, shape index: {}]
  %s10 = inlined_call_operand.vmem [shape: bf16[3,32,16], index: 10, kind: input, shape index: {}]
  %s11 = inlined_call_operand.vmem [shape: f32[32,1], index: 11, kind: input, shape index: {}]
  %s12 = inlined_call_operand.vmem [shape: f32[32,1], index: 12, kind: input, shape index: {}]
  %s13 = inlined_call_operand.vmem [shape: f32[32,1], index: 13, kind: input, shape index: {}]
  %s14 = inlined_call_operand.vmem [shape: bf16[3,8,32], index: 14, kind: input, shape index: {}]
  %s15 = inlined_call_operand.vmem [shape: f32[8,1], index: 15, kind: input, shape index: {}]
  %s16 = inlined_call_operand.hbm [shape: f32[8,128], index: 16, kind: output, shape index: {0}]
  %s17 = inlined_call_operand.hbm [shape: f32[1,1], index: 17, kind: output, shape index: {1}]
  %18 = xla_tuple %s16, %s17
  %s19 = sld [smem:[#allocation0]]
  $region82: #{cheb_anomaly_detector_forward.1} parent=0
    _
  %s21 = ssub.s32 1, %s19
  %s22 = scalar_select 0, %s21, %s19
  $region1: #{cheb_anomaly_detector_forward.1} parent=0
    #allocation2 [shape = 'u8[4096]{0}', space=vmem, size = 0x1000, scoped, tag = 'output window, operand 0, single buffered']
    #allocation3 [shape = 's32[1]{0}', space=sflag, size = 0x4, scoped, tag = 'scoped memory for cheb_anomaly_detector_forward.1']
    #allocation4 [shape = 'u8[512]{0}', space=vmem, size = 0x400, scoped, tag = 'output window, operand 1, single buffered']
    #allocation5 [shape = 's32[1]{0}', space=sflag, size = 0x4, scoped, tag = 'scoped memory for cheb_anomaly_detector_forward.1']
    %23 = vsyncpa [#allocation3], 0
    %24 = vsyncpa [#allocation5], 0
    // Predicated region
    $region2: #{cheb_anomaly_detector_forward.1} parent=1 // pred_check
      _
    $region3: #{cheb_anomaly_detector_forward.1} parent=1 // pred_check_branch
      %26 = sbr.rel (0) target = $region5
    $region4: #{cheb_anomaly_detector_forward.1} parent=1 // pred_region
      _
    $region5: #{cheb_anomaly_detector_forward.1} parent=1 // pred_fallthru
      _
    // Predicated region
    $region6: #{cheb_anomaly_detector_forward.1} parent=1 // pred_check
      _
    $region7: #{cheb_anomaly_detector_forward.1} parent=1 // pred_check_branch
      %28 = sbr.rel (0) target = $region9
    $region8: #{cheb_anomaly_detector_forward.1} parent=1 // pred_region
      _
    $region9: #{cheb_anomaly_detector_forward.1} parent=1 // pred_fallthru
      _
    // Predicated region
    $region10: #{cheb_anomaly_detector_forward.1} parent=1 // pred_check
      _
    $region11: #{cheb_anomaly_detector_forward.1} parent=1 // pred_check_branch
      %30 = sbr.rel (0) target = $region13
    $region12: #{cheb_anomaly_detector_forward.1} parent=1 // pred_region
      _
    $region13: #{cheb_anomaly_detector_forward.1} parent=1 // pred_fallthru
      _
    // Predicated region
    $region14: #{cheb_anomaly_detector_forward.1} parent=1 // pred_check
      _
    $region15: #{cheb_anomaly_detector_forward.1} parent=1 // pred_check_branch
      %32 = sbr.rel (0) target = $region17
    $region16: #{cheb_anomaly_detector_forward.1} parent=1 // pred_region
      _
    $region17: #{cheb_anomaly_detector_forward.1} parent=1 // pred_fallthru
      _
    // Predicated region
    $region18: #{cheb_anomaly_detector_forward.1} parent=1 // pred_check
      _
    $region19: #{cheb_anomaly_detector_forward.1} parent=1 // pred_check_branch
      %34 = sbr.rel (0) target = $region21
    $region20: #{cheb_anomaly_detector_forward.1} parent=1 // pred_region
      _
    $region21: #{cheb_anomaly_detector_forward.1} parent=1 // pred_fallthru
      _
    // Predicated region
    $region22: #{cheb_anomaly_detector_forward.1} parent=1 // pred_check
      _
    $region23: #{cheb_anomaly_detector_forward.1} parent=1 // pred_check_branch
      %36 = sbr.rel (0) target = $region25
    $region24: #{cheb_anomaly_detector_forward.1} parent=1 // pred_region
      _
    $region25: #{cheb_anomaly_detector_forward.1} parent=1 // pred_fallthru
      _
    // Predicated region
    $region26: #{cheb_anomaly_detector_forward.1} parent=1 // pred_check
      _
    $region27: #{cheb_anomaly_detector_forward.1} parent=1 // pred_check_branch
      %38 = sbr.rel (0) target = $region29
    $region28: #{cheb_anomaly_detector_forward.1} parent=1 // pred_region
      _
    $region29: #{cheb_anomaly_detector_forward.1} parent=1 // pred_fallthru
      _
    // Predicated region
    $region30: #{cheb_anomaly_detector_forward.1} parent=1 // pred_check
      _
    $region31: #{cheb_anomaly_detector_forward.1} parent=1 // pred_check_branch
      %40 = sbr.rel (0) target = $region33
    $region32: #{cheb_anomaly_detector_forward.1} parent=1 // pred_region
      _
    $region33: #{cheb_anomaly_detector_forward.1} parent=1 // pred_fallthru
      _
    // Predicated region
    $region34: #{cheb_anomaly_detector_forward.1} parent=1 // pred_check
      _
    $region35: #{cheb_anomaly_detector_forward.1} parent=1 // pred_check_branch
      %42 = sbr.rel (0) target = $region37
    $region36: #{cheb_anomaly_detector_forward.1} parent=1 // pred_region
      _
    $region37: #{cheb_anomaly_detector_forward.1} parent=1 // pred_fallthru
      _
    // Predicated region
    $region38: #{cheb_anomaly_detector_forward.1} parent=1 // pred_check
      _
    $region39: #{cheb_anomaly_detector_forward.1} parent=1 // pred_check_branch
      %44 = sbr.rel (0) target = $region41
    $region40: #{cheb_anomaly_detector_forward.1} parent=1 // pred_region
      _
    $region41: #{cheb_anomaly_detector_forward.1} parent=1 // pred_fallthru
      _
    // Predicated region
    $region42: #{cheb_anomaly_detector_forward.1} parent=1 // pred_check
      _
    $region43: #{cheb_anomaly_detector_forward.1} parent=1 // pred_check_branch
      %46 = sbr.rel (0) target = $region45
    $region44: #{cheb_anomaly_detector_forward.1} parent=1 // pred_region
      _
    $region45: #{cheb_anomaly_detector_forward.1} parent=1 // pred_fallthru
      _
    // Predicated region
    $region46: #{cheb_anomaly_detector_forward.1} parent=1 // pred_check
      _
    $region47: #{cheb_anomaly_detector_forward.1} parent=1 // pred_check_branch
      %48 = sbr.rel (0) target = $region49
    $region48: #{cheb_anomaly_detector_forward.1} parent=1 // pred_region
      _
    $region49: #{cheb_anomaly_detector_forward.1} parent=1 // pred_fallthru
      _
    // Predicated region
    $region50: #{cheb_anomaly_detector_forward.1} parent=1 // pred_check
      _
    $region51: #{cheb_anomaly_detector_forward.1} parent=1 // pred_check_branch
      %50 = sbr.rel (0) target = $region53
    $region52: #{cheb_anomaly_detector_forward.1} parent=1 // pred_region
      _
    $region53: #{cheb_anomaly_detector_forward.1} parent=1 // pred_fallthru
      _
    // Predicated region
    $region54: #{cheb_anomaly_detector_forward.1} parent=1 // pred_check
      _
    $region55: #{cheb_anomaly_detector_forward.1} parent=1 // pred_check_branch
      %52 = sbr.rel (0) target = $region57
    $region56: #{cheb_anomaly_detector_forward.1} parent=1 // pred_region
      _
    $region57: #{cheb_anomaly_detector_forward.1} parent=1 // pred_fallthru
      _
    // Predicated region
    $region58: #{cheb_anomaly_detector_forward.1} parent=1 // pred_check
      _
    $region59: #{cheb_anomaly_detector_forward.1} parent=1 // pred_check_branch
      %54 = sbr.rel (0) target = $region61
    $region60: #{cheb_anomaly_detector_forward.1} parent=1 // pred_region
      _
    $region61: #{cheb_anomaly_detector_forward.1} parent=1 // pred_fallthru
      _
    // Predicated region
    $region62: #{cheb_anomaly_detector_forward.1} parent=1 // pred_check
      _
    $region63: #{cheb_anomaly_detector_forward.1} parent=1 // pred_check_branch
      %56 = sbr.rel (0) target = $region65
    $region64: #{cheb_anomaly_detector_forward.1} parent=1 // pred_region
      _
    $region65: #{cheb_anomaly_detector_forward.1} parent=1 // pred_fallthru
      _
    %v58 = vld [vmem:[%s1] sm:$0xff]
    %v59 = vld [vmem:[%s2] sm:$0xf]
    %v60 = vld [vmem:[%s2 + $0x4] sm:$0xf]
    %v61 = vld [vmem:[%s2 + $0x8] sm:$0xf]
    %v62 = vld [vmem:[%s2 + $0xc] sm:$0xf]
    %v63 = vpack.c.bf16 %v58, %v58
    %v64 = vld [vmem:[%s0] sm:$0xf]
    %v65 = vld [vmem:[%s0 + $0x4] sm:$0xf]
    %v66 = vld [vmem:[%s0 + $0x8] sm:$0xf]
    %v67 = vld [vmem:[%s0 + $0xc] sm:$0xf]
    %v68 = vld [vmem:[%s0 + $0x10] sm:$0xf]
    %v69 = vld [vmem:[%s0 + $0x14] sm:$0xf]
    %v70 = vld [vmem:[%s0 + $0x18] sm:$0xf]
    %v71 = vld [vmem:[%s0 + $0x1c] sm:$0xf]
    %v72 = vld [vmem:[%s0 + $0x20] sm:$0xf]
    %v73 = vld [vmem:[%s0 + $0x24] sm:$0xf]
    %v74 = vld [vmem:[%s0 + $0x28] sm:$0xf]
    %v75 = vld [vmem:[%s0 + $0x2c] sm:$0xf]
    %v76 = vld [vmem:[%s0 + $0x30] sm:$0xf]
    %v77 = vld [vmem:[%s0 + $0x34] sm:$0xf]
    %v78 = vld [vmem:[%s0 + $0x38] sm:$0xf]
    %v79 = vld [vmem:[%s0 + $0x3c] sm:$0xf]
    %v96 = vunpack.c.l.b16 %v64
    %v97 = vunpack.c.l.b16 %v65
    %v98 = vunpack.c.l.b16 %v66
    %v99 = vunpack.c.l.b16 %v67
    %v100 = vunpack.c.l.b16 %v68
    %v101 = vunpack.c.l.b16 %v69
    %v102 = vunpack.c.l.b16 %v70
    %v103 = vunpack.c.l.b16 %v71
    %v104 = vunpack.c.l.b16 %v72
    %v105 = vunpack.c.l.b16 %v73
    %v106 = vunpack.c.l.b16 %v74
    %v107 = vunpack.c.l.b16 %v75
    %v108 = vunpack.c.l.b16 %v76
    %v109 = vunpack.c.l.b16 %v77
    %v110 = vunpack.c.l.b16 %v78
    %v111 = vunpack.c.l.b16 %v79
    %v112 = vpack.c.b16 %v97, %v96
    %v113 = vpack.c.b16 %v99, %v98
    %v114 = vpack.c.b16 %v101, %v100
    %v115 = vpack.c.b16 %v103, %v102
    %v116 = vpack.c.b16 %v105, %v104
    %v117 = vpack.c.b16 %v107, %v106
    %v118 = vpack.c.b16 %v109, %v108
    %v119 = vpack.c.b16 %v111, %v110
    %128 = vmatpush.bf16.msra.mxu0 %v119
    %129 = vmatpush.bf16.msra.mxu0 %v118
    %130 = vmatpush.bf16.msra.mxu0 %v117
    %131 = vmatpush.bf16.msra.mxu0 %v116
    %132 = vmatpush.bf16.msra.mxu0 %v115
    %133 = vmatpush.bf16.msra.mxu0 %v114
    %134 = vmatpush.bf16.msra.mxu0 %v113
    %135 = vmatpush.bf16.msra.mxu0 %v112
    %136 = vmatmul.bf16.gmra.mxu0 %v63
    %v137 = vpop.f32.mrf.mxu0
    %v138 = vadd.f32 0.0, %v137
    %v139 = vpop.f32.mrf.mxu0
    %140 = vdwg.mxu0
    %s141 = scalar_lea.vmem %s2, 16
    %v142 = vld [vmem:[%s141] sm:$0xf]
    %v143 = vld [vmem:[%s141 + $0x4] sm:$0xf]
    %v144 = vld [vmem:[%s141 + $0x8] sm:$0xf]
    %v145 = vld [vmem:[%s141 + $0xc] sm:$0xf]
    %v146 = vpack.c.bf16 %v138, %v138
    %v151 = vunpack.c.l.b16 %v142
    %v152 = vunpack.c.l.b16 %v143
    %v153 = vunpack.c.l.b16 %v144
    %v154 = vunpack.c.l.b16 %v145
    %v155 = vpack.c.b16 %v152, %v151
    %v156 = vpack.c.b16 %v154, %v153
    %vm157 = vcmask 64512
    %v159 = vsel %vm157, %v155, 0
    %v162 = vsel %vm157, %v156, 0
    %vm164 = vcmask 1043456
    %v166 = vsel %vm164, %v146, 0
    %168 = vmatpush.bf16.msra.mxu0 0
    %169 = vmatpush.bf16.msra.mxu0 0
    %170 = vmatpush.bf16.msra.mxu0 0
    %171 = vmatpush.bf16.msra.mxu0 0
    %172 = vmatpush.bf16.msra.mxu0 0
    %173 = vmatpush.bf16.msra.mxu0 0
    %174 = vmatpush.bf16.msra.mxu0 0
    %175 = vmatpush.bf16.msra.mxu0 %v166
    %176 = vmatmul.bf16.gmra.mxu0 %v159
    %v177 = vpop.f32.mrf.mxu0
    %v178 = vadd.f32 0.0, %v177
    %v179 = vpop.f32.mrf.mxu0
    %v180 = vadd.f32 0.0, %v179
    %181 = vmatmul.bf16.gmra.mxu0 %v162
    %v182 = vpop.f32.mrf.mxu0
    %v183 = vadd.f32 0.0, %v182
    %v184 = vpop.f32.mrf.mxu0
    %v185 = vadd.f32 0.0, %v184
    %186 = vdwg.mxu0
    %v191 = vunpack.c.l.b16 %v59
    %v192 = vunpack.c.l.b16 %v60
    %v193 = vunpack.c.l.b16 %v61
    %v194 = vunpack.c.l.b16 %v62
    %v195 = vpack.c.b16 %v192, %v191
    %v196 = vpack.c.b16 %v194, %v193
    %v198 = vsel %vm157, %v195, 0
    %v201 = vsel %vm157, %v196, 0
    %v204 = vsel %vm164, %v63, 0
    %206 = vmatpush.bf16.msra.mxu0 0
    %207 = vmatpush.bf16.msra.mxu0 0
    %208 = vmatpush.bf16.msra.mxu0 0
    %209 = vmatpush.bf16.msra.mxu0 0
    %210 = vmatpush.bf16.msra.mxu0 0
    %211 = vmatpush.bf16.msra.mxu0 0
    %212 = vmatpush.bf16.msra.mxu0 0
    %213 = vmatpush.bf16.msra.mxu0 %v204
    %214 = vmatmul.bf16.gmra.mxu0 %v198
    %v215 = vpop.f32.mrf.mxu0
    %v216 = vadd.f32 %v178, %v215
    %v217 = vpop.f32.mrf.mxu0
    %v218 = vadd.f32 %v180, %v217
    %219 = vmatmul.bf16.gmra.mxu0 %v201
    %v220 = vpop.f32.mrf.mxu0
    %v221 = vadd.f32 %v183, %v220
    %v222 = vpop.f32.mrf.mxu0
    %v223 = vadd.f32 %v185, %v222
    %224 = vdwg.mxu0
    %225 = vmatpush.bf16.msra.mxu0 %v119
    %226 = vmatpush.bf16.msra.mxu0 %v118
    %227 = vmatpush.bf16.msra.mxu0 %v117
    %228 = vmatpush.bf16.msra.mxu0 %v116
    %229 = vmatpush.bf16.msra.mxu0 %v115
    %230 = vmatpush.bf16.msra.mxu0 %v114
    %231 = vmatpush.bf16.msra.mxu0 %v113
    %232 = vmatpush.bf16.msra.mxu0 %v112
    %233 = vmatmul.bf16.gmra.mxu0 %v146
    %v234 = vpop.f32.mrf.mxu0
    %v235 = vadd.f32 0.0, %v234
    %v236 = vpop.f32.mrf.mxu0
    %237 = vdwg.mxu0
    %v238 = vmul.f32 %v235, 2.0
    %v239 = vsub.f32 %v238, %v58
    %s240 = scalar_lea.vmem %s2, 32
    %v241 = vld [vmem:[%s240] sm:$0xf]
    %v242 = vld [vmem:[%s240 + $0x4] sm:$0xf]
    %v243 = vld [vmem:[%s240 + $0x8] sm:$0xf]
    %v244 = vld [vmem:[%s240 + $0xc] sm:$0xf]
    %v245 = vpack.c.bf16 %v239, %v239
    %v250 = vunpack.c.l.b16 %v241
    %v251 = vunpack.c.l.b16 %v242
    %v252 = vunpack.c.l.b16 %v243
    %v253 = vunpack.c.l.b16 %v244
    %v254 = vpack.c.b16 %v251, %v250
    %v255 = vpack.c.b16 %v253, %v252
    %v257 = vsel %vm157, %v254, 0
    %v260 = vsel %vm157, %v255, 0
    %v263 = vsel %vm164, %v245, 0
    %265 = vmatpush.bf16.msra.mxu0 0
    %266 = vmatpush.bf16.msra.mxu0 0
    %267 = vmatpush.bf16.msra.mxu0 0
    %268 = vmatpush.bf16.msra.mxu0 0
    %269 = vmatpush.bf16.msra.mxu0 0
    %270 = vmatpush.bf16.msra.mxu0 0
    %271 = vmatpush.bf16.msra.mxu0 0
    %272 = vmatpush.bf16.msra.mxu0 %v263
    %273 = vmatmul.bf16.gmra.mxu0 %v257
    %v274 = vpop.f32.mrf.mxu0
    %v275 = vadd.f32 0.0, %v274
    %v276 = vpop.f32.mrf.mxu0
    %v277 = vadd.f32 0.0, %v276
    %278 = vmatmul.bf16.gmra.mxu0 %v260
    %v279 = vpop.f32.mrf.mxu0
    %v280 = vadd.f32 0.0, %v279
    %v281 = vpop.f32.mrf.mxu0
    %v282 = vadd.f32 0.0, %v281
    %283 = vdwg.mxu0
    %v284 = vadd.f32 %v216, %v275
    %v285 = vadd.f32 %v218, %v277
    %v286 = vadd.f32 %v221, %v280
    %v287 = vadd.f32 %v223, %v282
    %v288 = vld [vmem:[%s3] sm:$0xff]
    %v289 = vld [vmem:[%s3 + $0x8] sm:$0xff]
    %v290 = vld [vmem:[%s3 + $0x10] sm:$0xff]
    %v291 = vld [vmem:[%s3 + $0x18] sm:$0xff]
    %293 = vset.pattern.permute.xlu0 0
    %294 = vperm.xlu0 %293, %v288
    %v295 = vpop.permute.xlu0 %294
    %298 = vset.pattern.permute.xlu0 0
    %299 = vperm.xlu0 %298, %v289
    %v300 = vpop.permute.xlu0 %299
    %303 = vset.pattern.permute.xlu0 0
    %304 = vperm.xlu0 %303, %v290
    %v305 = vpop.permute.xlu0 %304
    %308 = vset.pattern.permute.xlu0 0
    %309 = vperm.xlu0 %308, %v291
    %v310 = vpop.permute.xlu0 %309
    %v312 = vadd.f32 %v284, %v295
    %v313 = vadd.f32 %v285, %v300
    %v314 = vadd.f32 %v286, %v305
    %v315 = vadd.f32 %v287, %v310
    %316 = vadd.xlane.f32.xlu0 %v312
    %v317 = vpop.xlane.xlu0 %316
    %318 = vadd.xlane.f32.xlu0 %v313
    %v319 = vpop.xlane.xlu0 %318
    %320 = vadd.xlane.f32.xlu0 %v314
    %v321 = vpop.xlane.xlu0 %320
    %322 = vadd.xlane.f32.xlu0 %v315
    %v323 = vpop.xlane.xlu0 %322
    %v324 = vmul.f32 %v312, %v312
    %v325 = vmul.f32 %v313, %v313
    %v326 = vmul.f32 %v314, %v314
    %v327 = vmul.f32 %v315, %v315
    %328 = vadd.xlane.f32.xlu0 %v324
    %v329 = vpop.xlane.xlu0 %328
    %330 = vadd.xlane.f32.xlu0 %v325
    %v331 = vpop.xlane.xlu0 %330
    %332 = vadd.xlane.f32.xlu0 %v326
    %v333 = vpop.xlane.xlu0 %332
    %334 = vadd.xlane.f32.xlu0 %v327
    %v335 = vpop.xlane.xlu0 %334
    %v336 = vmul.f32 %v317, 0.0078125
    %v337 = vmul.f32 %v319, 0.0078125
    %v338 = vmul.f32 %v321, 0.0078125
    %v339 = vmul.f32 %v323, 0.0078125
    %v340 = vmul.f32 %v329, 0.0078125
    %v341 = vmul.f32 %v331, 0.0078125
    %v342 = vmul.f32 %v333, 0.0078125
    %v343 = vmul.f32 %v335, 0.0078125
    %v344 = vmul.f32 %v336, %v336
    %v345 = vmul.f32 %v337, %v337
    %v346 = vmul.f32 %v338, %v338
    %v347 = vmul.f32 %v339, %v339
    %v348 = vsub.f32 %v340, %v344
    %v349 = vsub.f32 %v341, %v345
    %v350 = vsub.f32 %v342, %v346
    %v351 = vsub.f32 %v343, %v347
    %v352 = vmax.f32 %v348, 0.0
    %v353 = vmax.f32 %v349, 0.0
    %v354 = vmax.f32 %v350, 0.0
    %v355 = vmax.f32 %v351, 0.0
    %v356 = vsub.f32 %v312, %v336
    %v357 = vsub.f32 %v313, %v337
    %v358 = vsub.f32 %v314, %v338
    %v359 = vsub.f32 %v315, %v339
    %v360 = vadd.f32 %v352, 1e-05
    %v361 = vadd.f32 %v353, 1e-05
    %v362 = vadd.f32 %v354, 1e-05
    %v363 = vadd.f32 %v355, 1e-05
    %v364 = vrsqrt.pop %v360
    %v365 = vmul.f32 %v364, %v360
    %v366 = vmul.f32 %v365, %v364
    %v367 = vmul.f32 0.5, %v366
    %v368 = vsub.f32 1.5, %v367
    %v369 = vmul.f32 %v364, %v368
    %vm370 = vweird.f32 %v360
    %vm371 = vweird.f32 %v364
    %vm372 = vmor %vm370, %vm371
    %v373 = vsel %vm372, %v364, %v369
    %v374 = vrsqrt.pop %v361
    %v375 = vmul.f32 %v374, %v361
    %v376 = vmul.f32 %v375, %v374
    %v377 = vmul.f32 0.5, %v376
    %v378 = vsub.f32 1.5, %v377
    %v379 = vmul.f32 %v374, %v378
    %vm380 = vweird.f32 %v361
    %vm381 = vweird.f32 %v374
    %vm382 = vmor %vm380, %vm381
    %v383 = vsel %vm382, %v374, %v379
    %v384 = vrsqrt.pop %v362
    %v385 = vmul.f32 %v384, %v362
    %v386 = vmul.f32 %v385, %v384
    %v387 = vmul.f32 0.5, %v386
    %v388 = vsub.f32 1.5, %v387
    %v389 = vmul.f32 %v384, %v388
    %vm390 = vweird.f32 %v362
    %vm391 = vweird.f32 %v384
    %vm392 = vmor %vm390, %vm391
    %v393 = vsel %vm392, %v384, %v389
    %v394 = vrsqrt.pop %v363
    %v395 = vmul.f32 %v394, %v363
    %v396 = vmul.f32 %v395, %v394
    %v397 = vmul.f32 0.5, %v396
    %v398 = vsub.f32 1.5, %v397
    %v399 = vmul.f32 %v394, %v398
    %vm400 = vweird.f32 %v363
    %vm401 = vweird.f32 %v394
    %vm402 = vmor %vm400, %vm401
    %v403 = vsel %vm402, %v394, %v399
    %v404 = vmul.f32 %v356, %v373
    %v405 = vmul.f32 %v357, %v383
    %v406 = vmul.f32 %v358, %v393
    %v407 = vmul.f32 %v359, %v403
    %v408 = vld [vmem:[%s4] sm:$0xff]
    %v409 = vld [vmem:[%s4 + $0x8] sm:$0xff]
    %v410 = vld [vmem:[%s4 + $0x10] sm:$0xff]
    %v411 = vld [vmem:[%s4 + $0x18] sm:$0xff]
    %413 = vset.pattern.permute.xlu0 0
    %414 = vperm.xlu0 %413, %v408
    %v415 = vpop.permute.xlu0 %414
    %418 = vset.pattern.permute.xlu0 0
    %419 = vperm.xlu0 %418, %v409
    %v420 = vpop.permute.xlu0 %419
    %423 = vset.pattern.permute.xlu0 0
    %424 = vperm.xlu0 %423, %v410
    %v425 = vpop.permute.xlu0 %424
    %428 = vset.pattern.permute.xlu0 0
    %429 = vperm.xlu0 %428, %v411
    %v430 = vpop.permute.xlu0 %429
    %v432 = vmul.f32 %v404, %v415
    %v433 = vmul.f32 %v405, %v420
    %v434 = vmul.f32 %v406, %v425
    %v435 = vmul.f32 %v407, %v430
    %v436 = vld [vmem:[%s5] sm:$0xff]
    %v437 = vld [vmem:[%s5 + $0x8] sm:$0xff]
    %v438 = vld [vmem:[%s5 + $0x10] sm:$0xff]
    %v439 = vld [vmem:[%s5 + $0x18] sm:$0xff]
    %441 = vset.pattern.permute.xlu0 0
    %442 = vperm.xlu0 %441, %v436
    %v443 = vpop.permute.xlu0 %442
    %446 = vset.pattern.permute.xlu0 0
    %447 = vperm.xlu0 %446, %v437
    %v448 = vpop.permute.xlu0 %447
    %451 = vset.pattern.permute.xlu0 0
    %452 = vperm.xlu0 %451, %v438
    %v453 = vpop.permute.xlu0 %452
    %456 = vset.pattern.permute.xlu0 0
    %457 = vperm.xlu0 %456, %v439
    %v458 = vpop.permute.xlu0 %457
    %v460 = vadd.f32 %v432, %v443
    %v461 = vadd.f32 %v433, %v448
    %v462 = vadd.f32 %v434, %v453
    %v463 = vadd.f32 %v435, %v458
    %vm464 = vcmp.gt.f32.partialorder %v460, 0.0
    %vm465 = vcmp.gt.f32.partialorder %v461, 0.0
    %vm466 = vcmp.gt.f32.partialorder %v462, 0.0
    %vm467 = vcmp.gt.f32.partialorder %v463, 0.0
    %v468 = vmul.f32 %v460, 0.01
    %v469 = vmul.f32 %v461, 0.01
    %v470 = vmul.f32 %v462, 0.01
    %v471 = vmul.f32 %v463, 0.01
    %v472 = vsel %vm464, %v460, %v468
    %v473 = vsel %vm465, %v461, %v469
    %v474 = vsel %vm466, %v462, %v470
    %v475 = vsel %vm467, %v463, %v471
    %v476 = vld [vmem:[%s6] sm:$0xf]
    %v477 = vld [vmem:[%s6 + $0x4] sm:$0xf]
    %v478 = vpack.c.bf16 %v473, %v472
    %v479 = vpack.c.bf16 %v475, %v474
    %480 = vmatpush.bf16.msra.mxu0 %v119
    %481 = vmatpush.bf16.msra.mxu0 %v118
    %482 = vmatpush.bf16.msra.mxu0 %v117
    %483 = vmatpush.bf16.msra.mxu0 %v116
    %484 = vmatpush.bf16.msra.mxu0 %v115
    %485 = vmatpush.bf16.msra.mxu0 %v114
    %486 = vmatpush.bf16.msra.mxu0 %v113
    %487 = vmatpush.bf16.msra.mxu0 %v112
    %488 = vmatmul.bf16.gmra.mxu0 %v478
    %v489 = vpop.f32.mrf.mxu0
    %v490 = vadd.f32 0.0, %v489
    %v491 = vpop.f32.mrf.mxu0
    %v492 = vadd.f32 0.0, %v491
    %493 = vmatmul.bf16.gmra.mxu0 %v479
    %v494 = vpop.f32.mrf.mxu0
    %v495 = vadd.f32 0.0, %v494
    %v496 = vpop.f32.mrf.mxu0
    %v497 = vadd.f32 0.0, %v496
    %498 = vdwg.mxu0
    %s499 = scalar_lea.vmem %s6, 8
    %v500 = vld [vmem:[%s499] sm:$0xf]
    %v501 = vld [vmem:[%s499 + $0x4] sm:$0xf]
    %v502 = vpack.c.bf16 %v492, %v490
    %v503 = vpack.c.bf16 %v497, %v495
    %v506 = vunpack.c.l.b16 %v500
    %v507 = vunpack.c.l.b16 %v501
    %v508 = vpack.c.b16 %v507, %v506
    %vm509 = vcmask 261120
    %v511 = vsel %vm509, %v508, 0
    %513 = vmatpush.bf16.msra.mxu0 0
    %514 = vmatpush.bf16.msra.mxu0 0
    %515 = vmatpush.bf16.msra.mxu0 0
    %516 = vmatpush.bf16.msra.mxu0 0
    %517 = vmatpush.bf16.msra.mxu0 0
    %518 = vmatpush.bf16.msra.mxu0 0
    %519 = vmatpush.bf16.msra.mxu0 %v503
    %520 = vmatpush.bf16.msra.mxu0 %v502
    %521 = vmatmul.bf16.gmra.mxu0 %v511
    %v522 = vpop.f32.mrf.mxu0
    %v523 = vadd.f32 0.0, %v522
    %v524 = vpop.f32.mrf.mxu0
    %v525 = vadd.f32 0.0, %v524
    %526 = vdwg.mxu0
    %v529 = vunpack.c.l.b16 %v476
    %v530 = vunpack.c.l.b16 %v477
    %v531 = vpack.c.b16 %v530, %v529
    %v533 = vsel %vm509, %v531, 0
    %535 = vmatpush.bf16.msra.mxu0 0
    %536 = vmatpush.bf16.msra.mxu0 0
    %537 = vmatpush.bf16.msra.mxu0 0
    %538 = vmatpush.bf16.msra.mxu0 0
    %539 = vmatpush.bf16.msra.mxu0 0
    %540 = vmatpush.bf16.msra.mxu0 0
    %541 = vmatpush.bf16.msra.mxu0 %v479
    %542 = vmatpush.bf16.msra.mxu0 %v478
    %543 = vmatmul.bf16.gmra.mxu0 %v533
    %v544 = vpop.f32.mrf.mxu0
    %v545 = vadd.f32 %v523, %v544
    %v546 = vpop.f32.mrf.mxu0
    %v547 = vadd.f32 %v525, %v546
    %548 = vdwg.mxu0
    %549 = vmatpush.bf16.msra.mxu0 %v119
    %550 = vmatpush.bf16.msra.mxu0 %v118
    %551 = vmatpush.bf16.msra.mxu0 %v117
    %552 = vmatpush.bf16.msra.mxu0 %v116
    %553 = vmatpush.bf16.msra.mxu0 %v115
    %554 = vmatpush.bf16.msra.mxu0 %v114
    %555 = vmatpush.bf16.msra.mxu0 %v113
    %556 = vmatpush.bf16.msra.mxu0 %v112
    %557 = vmatmul.bf16.gmra.mxu0 %v502
    %v558 = vpop.f32.mrf.mxu0
    %v559 = vadd.f32 0.0, %v558
    %v560 = vpop.f32.mrf.mxu0
    %v561 = vadd.f32 0.0, %v560
    %562 = vmatmul.bf16.gmra.mxu0 %v503
    %v563 = vpop.f32.mrf.mxu0
    %v564 = vadd.f32 0.0, %v563
    %v565 = vpop.f32.mrf.mxu0
    %v566 = vadd.f32 0.0, %v565
    %567 = vdwg.mxu0
    %v568 = vmul.f32 %v559, 2.0
    %v569 = vmul.f32 %v561, 2.0
    %v570 = vmul.f32 %v564, 2.0
    %v571 = vmul.f32 %v566, 2.0
    %v572 = vsub.f32 %v568, %v472
    %v573 = vsub.f32 %v569, %v473
    %v574 = vsub.f32 %v570, %v474
    %v575 = vsub.f32 %v571, %v475
    %s576 = scalar_lea.vmem %s6, 16
    %v577 = vld [vmem:[%s576] sm:$0xf]
    %v578 = vld [vmem:[%s576 + $0x4] sm:$0xf]
    %v579 = vpack.c.bf16 %v573, %v572
    %v580 = vpack.c.bf16 %v575, %v574
    %v583 = vunpack.c.l.b16 %v577
    %v584 = vunpack.c.l.b16 %v578
    %v585 = vpack.c.b16 %v584, %v583
    %v587 = vsel %vm509, %v585, 0
    %589 = vmatpush.bf16.msra.mxu0 0
    %590 = vmatpush.bf16.msra.mxu0 0
    %591 = vmatpush.bf16.msra.mxu0 0
    %592 = vmatpush.bf16.msra.mxu0 0
    %593 = vmatpush.bf16.msra.mxu0 0
    %594 = vmatpush.bf16.msra.mxu0 0
    %595 = vmatpush.bf16.msra.mxu0 %v580
    %596 = vmatpush.bf16.msra.mxu0 %v579
    %597 = vmatmul.bf16.gmra.mxu0 %v587
    %v598 = vpop.f32.mrf.mxu0
    %v599 = vadd.f32 0.0, %v598
    %v600 = vpop.f32.mrf.mxu0
    %v601 = vadd.f32 0.0, %v600
    %602 = vdwg.mxu0
    %v603 = vadd.f32 %v545, %v599
    %v604 = vadd.f32 %v547, %v601
    %v605 = vld [vmem:[%s7] sm:$0xff]
    %v606 = vld [vmem:[%s7 + $0x8] sm:$0xff]
    %608 = vset.pattern.permute.xlu0 0
    %609 = vperm.xlu0 %608, %v605
    %v610 = vpop.permute.xlu0 %609
    %613 = vset.pattern.permute.xlu0 0
    %614 = vperm.xlu0 %613, %v606
    %v615 = vpop.permute.xlu0 %614
    %v617 = vadd.f32 %v603, %v610
    %v618 = vadd.f32 %v604, %v615
    %619 = vadd.xlane.f32.xlu0 %v617
    %v620 = vpop.xlane.xlu0 %619
    %621 = vadd.xlane.f32.xlu0 %v618
    %v622 = vpop.xlane.xlu0 %621
    %v623 = vmul.f32 %v617, %v617
    %v624 = vmul.f32 %v618, %v618
    %625 = vadd.xlane.f32.xlu0 %v623
    %v626 = vpop.xlane.xlu0 %625
    %627 = vadd.xlane.f32.xlu0 %v624
    %v628 = vpop.xlane.xlu0 %627
    %v629 = vmul.f32 %v620, 0.0078125
    %v630 = vmul.f32 %v622, 0.0078125
    %v631 = vmul.f32 %v626, 0.0078125
    %v632 = vmul.f32 %v628, 0.0078125
    %v633 = vmul.f32 %v629, %v629
    %v634 = vmul.f32 %v630, %v630
    %v635 = vsub.f32 %v631, %v633
    %v636 = vsub.f32 %v632, %v634
    %v637 = vmax.f32 %v635, 0.0
    %v638 = vmax.f32 %v636, 0.0
    %v639 = vsub.f32 %v617, %v629
    %v640 = vsub.f32 %v618, %v630
    %v641 = vadd.f32 %v637, 1e-05
    %v642 = vadd.f32 %v638, 1e-05
    %v643 = vrsqrt.pop %v641
    %v644 = vmul.f32 %v643, %v641
    %v645 = vmul.f32 %v644, %v643
    %v646 = vmul.f32 0.5, %v645
    %v647 = vsub.f32 1.5, %v646
    %v648 = vmul.f32 %v643, %v647
    %vm649 = vweird.f32 %v641
    %vm650 = vweird.f32 %v643
    %vm651 = vmor %vm649, %vm650
    %v652 = vsel %vm651, %v643, %v648
    %v653 = vrsqrt.pop %v642
    %v654 = vmul.f32 %v653, %v642
    %v655 = vmul.f32 %v654, %v653
    %v656 = vmul.f32 0.5, %v655
    %v657 = vsub.f32 1.5, %v656
    %v658 = vmul.f32 %v653, %v657
    %vm659 = vweird.f32 %v642
    %vm660 = vweird.f32 %v653
    %vm661 = vmor %vm659, %vm660
    %v662 = vsel %vm661, %v653, %v658
    %v663 = vmul.f32 %v639, %v652
    %v664 = vmul.f32 %v640, %v662
    %v665 = vld [vmem:[%s8] sm:$0xff]
    %v666 = vld [vmem:[%s8 + $0x8] sm:$0xff]
    %668 = vset.pattern.permute.xlu0 0
    %669 = vperm.xlu0 %668, %v665
    %v670 = vpop.permute.xlu0 %669
    %673 = vset.pattern.permute.xlu0 0
    %674 = vperm.xlu0 %673, %v666
    %v675 = vpop.permute.xlu0 %674
    %v677 = vmul.f32 %v663, %v670
    %v678 = vmul.f32 %v664, %v675
    %v679 = vld [vmem:[%s9] sm:$0xff]
    %v680 = vld [vmem:[%s9 + $0x8] sm:$0xff]
    %682 = vset.pattern.permute.xlu0 0
    %683 = vperm.xlu0 %682, %v679
    %v684 = vpop.permute.xlu0 %683
    %687 = vset.pattern.permute.xlu0 0
    %688 = vperm.xlu0 %687, %v680
    %v689 = vpop.permute.xlu0 %688
    %v691 = vadd.f32 %v677, %v684
    %v692 = vadd.f32 %v678, %v689
    %vm693 = vcmp.gt.f32.partialorder %v691, 0.0
    %vm694 = vcmp.gt.f32.partialorder %v692, 0.0
    %v695 = vmul.f32 %v691, 0.01
    %v696 = vmul.f32 %v692, 0.01
    %v697 = vsel %vm693, %v691, %v695
    %v698 = vsel %vm694, %v692, %v696
    %v699 = vld [vmem:[%s10] sm:$0xf]
    %v700 = vld [vmem:[%s10 + $0x4] sm:$0xf]
    %v701 = vld [vmem:[%s10 + $0x8] sm:$0xf]
    %v702 = vld [vmem:[%s10 + $0xc] sm:$0xf]
    %v703 = vpack.c.bf16 %v698, %v697
    %704 = vmatpush.bf16.msra.mxu0 %v119
    %705 = vmatpush.bf16.msra.mxu0 %v118
    %706 = vmatpush.bf16.msra.mxu0 %v117
    %707 = vmatpush.bf16.msra.mxu0 %v116
    %708 = vmatpush.bf16.msra.mxu0 %v115
    %709 = vmatpush.bf16.msra.mxu0 %v114
    %710 = vmatpush.bf16.msra.mxu0 %v113
    %711 = vmatpush.bf16.msra.mxu0 %v112
    %712 = vmatmul.bf16.gmra.mxu0 %v703
    %v713 = vpop.f32.mrf.mxu0
    %v714 = vadd.f32 0.0, %v713
    %v715 = vpop.f32.mrf.mxu0
    %v716 = vadd.f32 0.0, %v715
    %717 = vdwg.mxu0
    %s718 = scalar_lea.vmem %s10, 16
    %v719 = vld [vmem:[%s718] sm:$0xf]
    %v720 = vld [vmem:[%s718 + $0x4] sm:$0xf]
    %v721 = vld [vmem:[%s718 + $0x8] sm:$0xf]
    %v722 = vld [vmem:[%s718 + $0xc] sm:$0xf]
    %v723 = vpack.c.bf16 %v716, %v714
    %v728 = vunpack.c.l.b16 %v719
    %v729 = vunpack.c.l.b16 %v720
    %v730 = vunpack.c.l.b16 %v721
    %v731 = vunpack.c.l.b16 %v722
    %v732 = vpack.c.b16 %v729, %v728
    %v733 = vpack.c.b16 %v731, %v730
    %vm734 = vcmask 130048
    %v736 = vsel %vm734, %v732, 0
    %v739 = vsel %vm734, %v733, 0
    %741 = vmatpush.bf16.msra.mxu0 0
    %742 = vmatpush.bf16.msra.mxu0 0
    %743 = vmatpush.bf16.msra.mxu0 0
    %744 = vmatpush.bf16.msra.mxu0 0
    %745 = vmatpush.bf16.msra.mxu0 0
    %746 = vmatpush.bf16.msra.mxu0 0
    %747 = vmatpush.bf16.msra.mxu0 0
    %748 = vmatpush.bf16.msra.mxu0 %v723
    %749 = vmatmul.bf16.gmra.mxu0 %v736
    %v750 = vpop.f32.mrf.mxu0
    %v751 = vadd.f32 0.0, %v750
    %v752 = vpop.f32.mrf.mxu0
    %v753 = vadd.f32 0.0, %v752
    %754 = vmatmul.bf16.gmra.mxu0 %v739
    %v755 = vpop.f32.mrf.mxu0
    %v756 = vadd.f32 0.0, %v755
    %v757 = vpop.f32.mrf.mxu0
    %v758 = vadd.f32 0.0, %v757
    %759 = vdwg.mxu0
    %v764 = vunpack.c.l.b16 %v699
    %v765 = vunpack.c.l.b16 %v700
    %v766 = vunpack.c.l.b16 %v701
    %v767 = vunpack.c.l.b16 %v702
    %v768 = vpack.c.b16 %v765, %v764
    %v769 = vpack.c.b16 %v767, %v766
    %v771 = vsel %vm734, %v768, 0
    %v774 = vsel %vm734, %v769, 0
    %776 = vmatpush.bf16.msra.mxu0 0
    %777 = vmatpush.bf16.msra.mxu0 0
    %778 = vmatpush.bf16.msra.mxu0 0
    %779 = vmatpush.bf16.msra.mxu0 0
    %780 = vmatpush.bf16.msra.mxu0 0
    %781 = vmatpush.bf16.msra.mxu0 0
    %782 = vmatpush.bf16.msra.mxu0 0
    %783 = vmatpush.bf16.msra.mxu0 %v703
    %784 = vmatmul.bf16.gmra.mxu0 %v771
    %v785 = vpop.f32.mrf.mxu0
    %v786 = vadd.f32 %v751, %v785
    %v787 = vpop.f32.mrf.mxu0
    %v788 = vadd.f32 %v753, %v787
    %789 = vmatmul.bf16.gmra.mxu0 %v774
    %v790 = vpop.f32.mrf.mxu0
    %v791 = vadd.f32 %v756, %v790
    %v792 = vpop.f32.mrf.mxu0
    %v793 = vadd.f32 %v758, %v792
    %794 = vdwg.mxu0
    %795 = vmatpush.bf16.msra.mxu0 %v119
    %796 = vmatpush.bf16.msra.mxu0 %v118
    %797 = vmatpush.bf16.msra.mxu0 %v117
    %798 = vmatpush.bf16.msra.mxu0 %v116
    %799 = vmatpush.bf16.msra.mxu0 %v115
    %800 = vmatpush.bf16.msra.mxu0 %v114
    %801 = vmatpush.bf16.msra.mxu0 %v113
    %802 = vmatpush.bf16.msra.mxu0 %v112
    %803 = vmatmul.bf16.gmra.mxu0 %v723
    %v804 = vpop.f32.mrf.mxu0
    %v805 = vadd.f32 0.0, %v804
    %v806 = vpop.f32.mrf.mxu0
    %v807 = vadd.f32 0.0, %v806
    %808 = vdwg.mxu0
    %v809 = vmul.f32 %v805, 2.0
    %v810 = vmul.f32 %v807, 2.0
    %v811 = vsub.f32 %v809, %v697
    %v812 = vsub.f32 %v810, %v698
    %s813 = scalar_lea.vmem %s10, 32
    %v814 = vld [vmem:[%s813] sm:$0xf]
    %v815 = vld [vmem:[%s813 + $0x4] sm:$0xf]
    %v816 = vld [vmem:[%s813 + $0x8] sm:$0xf]
    %v817 = vld [vmem:[%s813 + $0xc] sm:$0xf]
    %v818 = vpack.c.bf16 %v812, %v811
    %v823 = vunpack.c.l.b16 %v814
    %v824 = vunpack.c.l.b16 %v815
    %v825 = vunpack.c.l.b16 %v816
    %v826 = vunpack.c.l.b16 %v817
    %v827 = vpack.c.b16 %v824, %v823
    %v828 = vpack.c.b16 %v826, %v825
    %v830 = vsel %vm734, %v827, 0
    %v833 = vsel %vm734, %v828, 0
    %835 = vmatpush.bf16.msra.mxu0 0
    %836 = vmatpush.bf16.msra.mxu0 0
    %837 = vmatpush.bf16.msra.mxu0 0
    %838 = vmatpush.bf16.msra.mxu0 0
    %839 = vmatpush.bf16.msra.mxu0 0
    %840 = vmatpush.bf16.msra.mxu0 0
    %841 = vmatpush.bf16.msra.mxu0 0
    %842 = vmatpush.bf16.msra.mxu0 %v818
    %843 = vmatmul.bf16.gmra.mxu0 %v830
    %v844 = vpop.f32.mrf.mxu0
    %v845 = vadd.f32 0.0, %v844
    %v846 = vpop.f32.mrf.mxu0
    %v847 = vadd.f32 0.0, %v846
    %848 = vmatmul.bf16.gmra.mxu0 %v833
    %v849 = vpop.f32.mrf.mxu0
    %v850 = vadd.f32 0.0, %v849
    %v851 = vpop.f32.mrf.mxu0
    %v852 = vadd.f32 0.0, %v851
    %853 = vdwg.mxu0
    %v854 = vadd.f32 %v786, %v845
    %v855 = vadd.f32 %v788, %v847
    %v856 = vadd.f32 %v791, %v850
    %v857 = vadd.f32 %v793, %v852
    %v858 = vld [vmem:[%s11] sm:$0xff]
    %v859 = vld [vmem:[%s11 + $0x8] sm:$0xff]
    %v860 = vld [vmem:[%s11 + $0x10] sm:$0xff]
    %v861 = vld [vmem:[%s11 + $0x18] sm:$0xff]
    %863 = vset.pattern.permute.xlu0 0
    %864 = vperm.xlu0 %863, %v858
    %v865 = vpop.permute.xlu0 %864
    %868 = vset.pattern.permute.xlu0 0
    %869 = vperm.xlu0 %868, %v859
    %v870 = vpop.permute.xlu0 %869
    %873 = vset.pattern.permute.xlu0 0
    %874 = vperm.xlu0 %873, %v860
    %v875 = vpop.permute.xlu0 %874
    %878 = vset.pattern.permute.xlu0 0
    %879 = vperm.xlu0 %878, %v861
    %v880 = vpop.permute.xlu0 %879
    %v882 = vadd.f32 %v854, %v865
    %v883 = vadd.f32 %v855, %v870
    %v884 = vadd.f32 %v856, %v875
    %v885 = vadd.f32 %v857, %v880
    %886 = vadd.xlane.f32.xlu0 %v882
    %v887 = vpop.xlane.xlu0 %886
    %888 = vadd.xlane.f32.xlu0 %v883
    %v889 = vpop.xlane.xlu0 %888
    %890 = vadd.xlane.f32.xlu0 %v884
    %v891 = vpop.xlane.xlu0 %890
    %892 = vadd.xlane.f32.xlu0 %v885
    %v893 = vpop.xlane.xlu0 %892
    %v894 = vmul.f32 %v882, %v882
    %v895 = vmul.f32 %v883, %v883
    %v896 = vmul.f32 %v884, %v884
    %v897 = vmul.f32 %v885, %v885
    %898 = vadd.xlane.f32.xlu0 %v894
    %v899 = vpop.xlane.xlu0 %898
    %900 = vadd.xlane.f32.xlu0 %v895
    %v901 = vpop.xlane.xlu0 %900
    %902 = vadd.xlane.f32.xlu0 %v896
    %v903 = vpop.xlane.xlu0 %902
    %904 = vadd.xlane.f32.xlu0 %v897
    %v905 = vpop.xlane.xlu0 %904
    %v906 = vmul.f32 %v887, 0.0078125
    %v907 = vmul.f32 %v889, 0.0078125
    %v908 = vmul.f32 %v891, 0.0078125
    %v909 = vmul.f32 %v893, 0.0078125
    %v910 = vmul.f32 %v899, 0.0078125
    %v911 = vmul.f32 %v901, 0.0078125
    %v912 = vmul.f32 %v903, 0.0078125
    %v913 = vmul.f32 %v905, 0.0078125
    %v914 = vmul.f32 %v906, %v906
    %v915 = vmul.f32 %v907, %v907
    %v916 = vmul.f32 %v908, %v908
    %v917 = vmul.f32 %v909, %v909
    %v918 = vsub.f32 %v910, %v914
    %v919 = vsub.f32 %v911, %v915
    %v920 = vsub.f32 %v912, %v916
    %v921 = vsub.f32 %v913, %v917
    %v922 = vmax.f32 %v918, 0.0
    %v923 = vmax.f32 %v919, 0.0
    %v924 = vmax.f32 %v920, 0.0
    %v925 = vmax.f32 %v921, 0.0
    %v926 = vsub.f32 %v882, %v906
    %v927 = vsub.f32 %v883, %v907
    %v928 = vsub.f32 %v884, %v908
    %v929 = vsub.f32 %v885, %v909
    %v930 = vadd.f32 %v922, 1e-05
    %v931 = vadd.f32 %v923, 1e-05
    %v932 = vadd.f32 %v924, 1e-05
    %v933 = vadd.f32 %v925, 1e-05
    %v934 = vrsqrt.pop %v930
    %v935 = vmul.f32 %v934, %v930
    %v936 = vmul.f32 %v935, %v934
    %v937 = vmul.f32 0.5, %v936
    %v938 = vsub.f32 1.5, %v937
    %v939 = vmul.f32 %v934, %v938
    %vm940 = vweird.f32 %v930
    %vm941 = vweird.f32 %v934
    %vm942 = vmor %vm940, %vm941
    %v943 = vsel %vm942, %v934, %v939
    %v944 = vrsqrt.pop %v931
    %v945 = vmul.f32 %v944, %v931
    %v946 = vmul.f32 %v945, %v944
    %v947 = vmul.f32 0.5, %v946
    %v948 = vsub.f32 1.5, %v947
    %v949 = vmul.f32 %v944, %v948
    %vm950 = vweird.f32 %v931
    %vm951 = vweird.f32 %v944
    %vm952 = vmor %vm950, %vm951
    %v953 = vsel %vm952, %v944, %v949
    %v954 = vrsqrt.pop %v932
    %v955 = vmul.f32 %v954, %v932
    %v956 = vmul.f32 %v955, %v954
    %v957 = vmul.f32 0.5, %v956
    %v958 = vsub.f32 1.5, %v957
    %v959 = vmul.f32 %v954, %v958
    %vm960 = vweird.f32 %v932
    %vm961 = vweird.f32 %v954
    %vm962 = vmor %vm960, %vm961
    %v963 = vsel %vm962, %v954, %v959
    %v964 = vrsqrt.pop %v933
    %v965 = vmul.f32 %v964, %v933
    %v966 = vmul.f32 %v965, %v964
    %v967 = vmul.f32 0.5, %v966
    %v968 = vsub.f32 1.5, %v967
    %v969 = vmul.f32 %v964, %v968
    %vm970 = vweird.f32 %v933
    %vm971 = vweird.f32 %v964
    %vm972 = vmor %vm970, %vm971
    %v973 = vsel %vm972, %v964, %v969
    %v974 = vmul.f32 %v926, %v943
    %v975 = vmul.f32 %v927, %v953
    %v976 = vmul.f32 %v928, %v963
    %v977 = vmul.f32 %v929, %v973
    %v978 = vld [vmem:[%s12] sm:$0xff]
    %v979 = vld [vmem:[%s12 + $0x8] sm:$0xff]
    %v980 = vld [vmem:[%s12 + $0x10] sm:$0xff]
    %v981 = vld [vmem:[%s12 + $0x18] sm:$0xff]
    %983 = vset.pattern.permute.xlu0 0
    %984 = vperm.xlu0 %983, %v978
    %v985 = vpop.permute.xlu0 %984
    %988 = vset.pattern.permute.xlu0 0
    %989 = vperm.xlu0 %988, %v979
    %v990 = vpop.permute.xlu0 %989
    %993 = vset.pattern.permute.xlu0 0
    %994 = vperm.xlu0 %993, %v980
    %v995 = vpop.permute.xlu0 %994
    %998 = vset.pattern.permute.xlu0 0
    %999 = vperm.xlu0 %998, %v981
    %v1000 = vpop.permute.xlu0 %999
    %v1002 = vmul.f32 %v974, %v985
    %v1003 = vmul.f32 %v975, %v990
    %v1004 = vmul.f32 %v976, %v995
    %v1005 = vmul.f32 %v977, %v1000
    %v1006 = vld [vmem:[%s13] sm:$0xff]
    %v1007 = vld [vmem:[%s13 + $0x8] sm:$0xff]
    %v1008 = vld [vmem:[%s13 + $0x10] sm:$0xff]
    %v1009 = vld [vmem:[%s13 + $0x18] sm:$0xff]
    %1011 = vset.pattern.permute.xlu0 0
    %1012 = vperm.xlu0 %1011, %v1006
    %v1013 = vpop.permute.xlu0 %1012
    %1016 = vset.pattern.permute.xlu0 0
    %1017 = vperm.xlu0 %1016, %v1007
    %v1018 = vpop.permute.xlu0 %1017
    %1021 = vset.pattern.permute.xlu0 0
    %1022 = vperm.xlu0 %1021, %v1008
    %v1023 = vpop.permute.xlu0 %1022
    %1026 = vset.pattern.permute.xlu0 0
    %1027 = vperm.xlu0 %1026, %v1009
    %v1028 = vpop.permute.xlu0 %1027
    %v1030 = vadd.f32 %v1002, %v1013
    %v1031 = vadd.f32 %v1003, %v1018
    %v1032 = vadd.f32 %v1004, %v1023
    %v1033 = vadd.f32 %v1005, %v1028
    %vm1034 = vcmp.gt.f32.partialorder %v1030, 0.0
    %vm1035 = vcmp.gt.f32.partialorder %v1031, 0.0
    %vm1036 = vcmp.gt.f32.partialorder %v1032, 0.0
    %vm1037 = vcmp.gt.f32.partialorder %v1033, 0.0
    %v1038 = vmul.f32 %v1030, 0.01
    %v1039 = vmul.f32 %v1031, 0.01
    %v1040 = vmul.f32 %v1032, 0.01
    %v1041 = vmul.f32 %v1033, 0.01
    %v1042 = vsel %vm1034, %v1030, %v1038
    %v1043 = vsel %vm1035, %v1031, %v1039
    %v1044 = vsel %vm1036, %v1032, %v1040
    %v1045 = vsel %vm1037, %v1033, %v1041
    %v1046 = vld [vmem:[%s14] sm:$0xf]
    %v1047 = vpack.c.bf16 %v1043, %v1042
    %v1048 = vpack.c.bf16 %v1045, %v1044
    %1049 = vmatpush.bf16.msra.mxu0 %v119
    %1050 = vmatpush.bf16.msra.mxu0 %v118
    %1051 = vmatpush.bf16.msra.mxu0 %v117
    %1052 = vmatpush.bf16.msra.mxu0 %v116
    %1053 = vmatpush.bf16.msra.mxu0 %v115
    %1054 = vmatpush.bf16.msra.mxu0 %v114
    %1055 = vmatpush.bf16.msra.mxu0 %v113
    %1056 = vmatpush.bf16.msra.mxu0 %v112
    %1057 = vmatmul.bf16.gmra.mxu0 %v1047
    %v1058 = vpop.f32.mrf.mxu0
    %v1059 = vadd.f32 0.0, %v1058
    %v1060 = vpop.f32.mrf.mxu0
    %v1061 = vadd.f32 0.0, %v1060
    %1062 = vmatmul.bf16.gmra.mxu0 %v1048
    %v1063 = vpop.f32.mrf.mxu0
    %v1064 = vadd.f32 0.0, %v1063
    %v1065 = vpop.f32.mrf.mxu0
    %v1066 = vadd.f32 0.0, %v1065
    %1067 = vdwg.mxu0
    %s1068 = scalar_lea.vmem %s14, 4
    %v1069 = vld [vmem:[%s1068] sm:$0xf]
    %v1070 = vpack.c.bf16 %v1061, %v1059
    %v1071 = vpack.c.bf16 %v1066, %v1064
    %v1073 = vsel %vm509, %v1069, 0
    %1075 = vmatpush.bf16.msra.mxu0 0
    %1076 = vmatpush.bf16.msra.mxu0 0
    %1077 = vmatpush.bf16.msra.mxu0 0
    %1078 = vmatpush.bf16.msra.mxu0 0
    %1079 = vmatpush.bf16.msra.mxu0 0
    %1080 = vmatpush.bf16.msra.mxu0 0
    %1081 = vmatpush.bf16.msra.mxu0 %v1071
    %1082 = vmatpush.bf16.msra.mxu0 %v1070
    %1083 = vmatmul.bf16.gmra.mxu0 %v1073
    %v1084 = vpop.f32.mrf.mxu0
    %v1085 = vadd.f32 0.0, %v1084
    %v1086 = vpop.f32.mrf.mxu0
    %1087 = vdwg.mxu0
    %v1089 = vsel %vm509, %v1046, 0
    %1091 = vmatpush.bf16.msra.mxu0 0
    %1092 = vmatpush.bf16.msra.mxu0 0
    %1093 = vmatpush.bf16.msra.mxu0 0
    %1094 = vmatpush.bf16.msra.mxu0 0
    %1095 = vmatpush.bf16.msra.mxu0 0
    %1096 = vmatpush.bf16.msra.mxu0 0
    %1097 = vmatpush.bf16.msra.mxu0 %v1048
    %1098 = vmatpush.bf16.msra.mxu0 %v1047
    %1099 = vmatmul.bf16.gmra.mxu0 %v1089
    %v1100 = vpop.f32.mrf.mxu0
    %v1101 = vadd.f32 %v1085, %v1100
    %v1102 = vpop.f32.mrf.mxu0
    %1103 = vdwg.mxu0
    %1104 = vmatpush.bf16.msra.mxu0 %v119
    %1105 = vmatpush.bf16.msra.mxu0 %v118
    %1106 = vmatpush.bf16.msra.mxu0 %v117
    %1107 = vmatpush.bf16.msra.mxu0 %v116
    %1108 = vmatpush.bf16.msra.mxu0 %v115
    %1109 = vmatpush.bf16.msra.mxu0 %v114
    %1110 = vmatpush.bf16.msra.mxu0 %v113
    %1111 = vmatpush.bf16.msra.mxu0 %v112
    %1112 = vmatmul.bf16.gmra.mxu0 %v1070
    %v1113 = vpop.f32.mrf.mxu0
    %v1114 = vadd.f32 0.0, %v1113
    %v1115 = vpop.f32.mrf.mxu0
    %v1116 = vadd.f32 0.0, %v1115
    %1117 = vmatmul.bf16.gmra.mxu0 %v1071
    %v1118 = vpop.f32.mrf.mxu0
    %v1119 = vadd.f32 0.0, %v1118
    %v1120 = vpop.f32.mrf.mxu0
    %v1121 = vadd.f32 0.0, %v1120
    %1122 = vdwg.mxu0
    %v1123 = vmul.f32 %v1114, 2.0
    %v1124 = vmul.f32 %v1116, 2.0
    %v1125 = vmul.f32 %v1119, 2.0
    %v1126 = vmul.f32 %v1121, 2.0
    %v1127 = vsub.f32 %v1123, %v1042
    %v1128 = vsub.f32 %v1124, %v1043
    %v1129 = vsub.f32 %v1125, %v1044
    %v1130 = vsub.f32 %v1126, %v1045
    %s1131 = scalar_lea.vmem %s14, 8
    %v1132 = vld [vmem:[%s1131] sm:$0xf]
    %v1133 = vpack.c.bf16 %v1128, %v1127
    %v1134 = vpack.c.bf16 %v1130, %v1129
    %v1136 = vsel %vm509, %v1132, 0
    %1138 = vmatpush.bf16.msra.mxu0 0
    %1139 = vmatpush.bf16.msra.mxu0 0
    %1140 = vmatpush.bf16.msra.mxu0 0
    %1141 = vmatpush.bf16.msra.mxu0 0
    %1142 = vmatpush.bf16.msra.mxu0 0
    %1143 = vmatpush.bf16.msra.mxu0 0
    %1144 = vmatpush.bf16.msra.mxu0 %v1134
    %1145 = vmatpush.bf16.msra.mxu0 %v1133
    %1146 = vmatmul.bf16.gmra.mxu0 %v1136
    %v1147 = vpop.f32.mrf.mxu0
    %v1148 = vadd.f32 0.0, %v1147
    %v1149 = vpop.f32.mrf.mxu0
    %1150 = vdwg.mxu0
    %v1151 = vadd.f32 %v1101, %v1148
    %v1152 = vld [vmem:[%s15] sm:$0xff]
    %1154 = vset.pattern.permute.xlu0 0
    %1155 = vperm.xlu0 %1154, %v1152
    %v1156 = vpop.permute.xlu0 %1155
    %v1158 = vadd.f32 %v1151, %v1156
    %1159 = vst [vmem:[#allocation2] sm:$0xff] %v1158
    %v1160 = vsub.f32 %v1158, %v58
    %v1161 = vmul.f32 %v1160, %v1160
    %1162 = vadd.xlane.f32.xlu0 %v1161
    %v1163 = vpop.xlane.xlu0 %1162
    %v1164 = vrot.slane %v1163, 4
    %v1165 = vadd.f32 %v1163, %v1164
    %v1166 = vrot.slane %v1165, 2
    %v1167 = vadd.f32 %v1165, %v1166
    %v1168 = vrot.slane %v1167, 1
    %v1169 = vadd.f32 %v1167, %v1168
    %v1170 = vmul.f32 %v1169, 0.0009765625
    %vm1171 = vcmask 0
    %1172 = vst.msk [vmem:[#allocation4] sm:$0x1] %vm1171, %v1170
    // Predicated region
    $region66: #{cheb_anomaly_detector_forward.1} parent=1 // pred_check
      _
    $region67: #{cheb_anomaly_detector_forward.1} parent=1 // pred_check_branch
      %1174 = sbr.rel (0) target = $region69
    $region68: #{cheb_anomaly_detector_forward.1} parent=1 // pred_region
      %1176 = vsyncadd [#allocation3], 0
      %s1178 = sshll.u32 [#allocation2], 4
      %s1179 = int_to_ptr.vmem [resolvable:$true] %s1178
      %s1180 = sshll.u32 %s16, 4
      %s1181 = int_to_ptr.hbm [resolvable:$true] %s1180
      %1183 = dma.vmem_to_hbm [thread:$0]  %s1179, 128, %s1181, [#allocation3]
    $region69: #{cheb_anomaly_detector_forward.1} parent=1 // pred_fallthru
      _
    // Predicated region
    $region70: #{cheb_anomaly_detector_forward.1} parent=1 // pred_check
      _
    $region71: #{cheb_anomaly_detector_forward.1} parent=1 // pred_check_branch
      %1185 = sbr.rel (0) target = $region73
    $region72: #{cheb_anomaly_detector_forward.1} parent=1 // pred_region
      %1187 = vsyncadd [#allocation5], 0
      %s1189 = sshll.u32 [#allocation4], 4
      %s1190 = int_to_ptr.vmem [resolvable:$true] %s1189
      %s1191 = sshll.u32 %s17, 4
      %s1192 = int_to_ptr.hbm [resolvable:$true] %s1191
      %1194 = dma.vmem_to_hbm [thread:$0]  %s1190, 16, %s1192, [#allocation5]
    $region73: #{cheb_anomaly_detector_forward.1} parent=1 // pred_fallthru
      _
    // Predicated region
    $region74: #{cheb_anomaly_detector_forward.1} parent=1 // pred_check
      _
    $region75: #{cheb_anomaly_detector_forward.1} parent=1 // pred_check_branch
      %1196 = sbr.rel (0) target = $region77
    $region76: #{cheb_anomaly_detector_forward.1} parent=1 // pred_region
      %1198 = dma.done [#allocation3], 128
    $region77: #{cheb_anomaly_detector_forward.1} parent=1 // pred_fallthru
      _
    // Predicated region
    $region78: #{cheb_anomaly_detector_forward.1} parent=1 // pred_check
      _
    $region79: #{cheb_anomaly_detector_forward.1} parent=1 // pred_check_branch
      %1200 = sbr.rel (0) target = $region81
    $region80: #{cheb_anomaly_detector_forward.1} parent=1 // pred_region
      %1202 = dma.done [#allocation5], 16
    $region81: #{cheb_anomaly_detector_forward.1} parent=1 // pred_fallthru
      _
    %1203 = vsyncpa [#allocation3], 1
    %1204 = vsyncpa [#allocation5], 1

</llo_original>
